<compile_context>
chip_gen: v6e
topology: v6e:2x2x1
jax: 0.10.0
libtpu: 0.0.40
codegen_flags: <defaults>
</compile_context>

<pallas_src>
import jax
import jax.numpy as jnp
from jax.experimental import pallas as pl
from jax.experimental.pallas import tpu as pltpu

# ----------------------------- config ---------------------------------------
CHAR_TABLE_SIZE = 30          # vocab = CHAR_TABLE_SIZE + 2 = 32
CHAR_DIM = 16
HIDDEN_DIM = 32
VOCAB = CHAR_TABLE_SIZE + 2   # 32
VPAD = 128                    # lane-dense padded vocab for the output store
LN_EPS = 1e-5

B, S = 2, 8                   # batch, sequence length


# --------------------------- fused kernel -----------------------------------
def fused_kernel(idsmask_ref, emb_h_ref, wconv_ref, fc1_ref, fc2_ref,
                 smalls_ref, out_ref):
    """Whole forward for one row-tile: embed -> LN -> 3x GatedCNN -> fc.

    idsmask (rows,2) f32 [ids | pad-mask]     emb_h (V,H)  = emb_table @ w_c2h
    wconv   (3,3H,2H) rows=[prev|ctr|next], cols=[conv1|conv2]
    fc1 (3,H,4H)   fc2 (3,4H,H)
    smalls (8+H, VPAD): r0=ln_gamma r1=ln_beta r2..4=bconv r5=fc_b r8..=fc_w
    out (seqs_per_tile, S, VPAD)
    """
    n_seq, s, _ = out_ref.shape
    rows = idsmask_ref.shape[0]            # == n_seq * s
    v, h = emb_h_ref.shape

    ids_i = idsmask_ref[:, 0:1].astype(jnp.int32)        # (rows,1)
    m = idsmask_ref[:, 1:2]                              # (rows,1) padding mask

    # ---- embedding lookup: one-hot x folded (V,H) table, single MXU dot ----
    one_hot = (jax.lax.broadcasted_iota(jnp.int32, (rows, v), 1) == ids_i
               ).astype(jnp.float32)                     # (rows,V)
    x = jnp.dot(one_hot, emb_h_ref[...],
                preferred_element_type=jnp.float32)      # (rows,H)

    # ---- LayerNorm ----
    ln_g = smalls_ref[0:1, 0:h]
    ln_b = smalls_ref[1:2, 0:h]
    mu = jnp.mean(x, axis=-1, keepdims=True)
    var = jnp.mean((x - mu) ** 2, axis=-1, keepdims=True)
    x = (x - mu) * jax.lax.rsqrt(var + LN_EPS) * ln_g + ln_b

    # ---- sequence-boundary masks, computed in-kernel (f32 VPU math only) ----
    ridx = jax.lax.broadcasted_iota(jnp.int32, (rows, h), 0).astype(jnp.float32)
    s_f = float(s)
    pos = ridx - jnp.floor(ridx * (1.0 / s_f)) * s_f     # row position in [0,s)
    fm = (pos > 0.5).astype(jnp.float32)                 # 0 on first row of seq
    lm = (pos < s_f - 1.5).astype(jnp.float32)           # 0 on last  row of seq

    # ---- 3 GatedCNN blocks (kernel_size=3, 'same' zero padding, fc layer) ----
    for blk in range(3):
        w = wconv_ref[blk]                               # (3H,2H)
        bcv = smalls_ref[2 + blk:3 + blk, 0:2 * h]       # (1,2H)
        # zero-padded conv shifts; masks kill cross-sequence / wrap leakage
        x_prev = pltpu.roll(x, shift=1, axis=0) * fm
        x_next = pltpu.roll(x, shift=rows - 1, axis=0) * lm
        conv = (jnp.dot(x_prev, w[:h], preferred_element_type=jnp.float32)
                + jnp.dot(x, w[h:2 * h], preferred_element_type=jnp.float32)
                + jnp.dot(x_next, w[2 * h:], preferred_element_type=jnp.float32)
                + bcv)                                   # (rows,2H)
        src1 = conv[:, :h]                               # conv1 out
        src2 = jax.nn.sigmoid(conv[:, h:])               # conv2 gate
        src = (x + src2 * (src1 - x)) * m                # == x*(1-s2)+s1*s2
        hid = jnp.maximum(
            jnp.dot(src, fc1_ref[blk], preferred_element_type=jnp.float32), 0.0)
        x = jnp.dot(hid, fc2_ref[blk], preferred_element_type=jnp.float32)

    # ---- final Linear(H -> VPAD), lane-dense store into (n_seq, S, VPAD) ----
    fcw = smalls_ref[8:8 + h, :]                         # (H,VPAD)
    fcb = smalls_ref[5:6, :]                             # (1,VPAD)
    logits = jnp.dot(x, fcw, preferred_element_type=jnp.float32) + fcb
    for q in range(n_seq):                               # static unrolled stores
        out_ref[q] = logits[q * s:(q + 1) * s, :]


# --------------------------- wrapper ----------------------------------------
def _seqs_per_tile(b, s, target_rows=256):
    """Whole-sequence row tiles, ~256 rows per grid step when batched."""
    best = 1
    for cand in range(1, b + 1):
        if b % cand == 0 and cand * s <= target_rows:
            best = cand
    if b // best > 1 and (best * s) % 8 != 0:
        best = b          # fall back to a single tile (block == full array)
    return best


@jax.jit
def couplet_forward(kparams, ids, mask):
    b, s = ids.shape
    bs = b * s
    spt = _seqs_per_tile(b, s)
    ntiles = b // spt
    tile_rows = spt * s

    # single packed activation operand: [ids | mask]  (ids < 2^24, exact in f32)
    idsmask = jnp.concatenate(
        [ids.reshape(bs, 1).astype(jnp.float32),
         mask.reshape(bs, 1).astype(jnp.float32)], axis=1)      # (bs,2)

    grid_spec = pltpu.PrefetchScalarGridSpec(
        num_scalar_prefetch=0,
        grid=(ntiles,),
        in_specs=[
            pl.BlockSpec((tile_rows, 2), lambda i: (i, 0)),
            # weights: grid-invariant full-array blocks (stay VMEM-resident)
            pl.BlockSpec(kparams["emb_h"].shape, lambda i: (0, 0)),
            pl.BlockSpec(kparams["wconv"].shape, lambda i: (0, 0, 0)),
            pl.BlockSpec(kparams["fc1"].shape, lambda i: (0, 0, 0)),
            pl.BlockSpec(kparams["fc2"].shape, lambda i: (0, 0, 0)),
            pl.BlockSpec(kparams["smalls"].shape, lambda i: (0, 0)),
        ],
        out_specs=pl.BlockSpec((spt, s, VPAD), lambda i: (i, 0, 0)),
    )
    out = pl.pallas_call(
        fused_kernel,
        out_shape=jax.ShapeDtypeStruct((b, s, VPAD), jnp.float32),
        grid_spec=grid_spec,
        compiler_params=pltpu.CompilerParams(
            dimension_semantics=("parallel",)),   # v7x: 2 TCs split row tiles
    )(idsmask, kparams["emb_h"], kparams["wconv"], kparams["fc1"],
      kparams["fc2"], kparams["smalls"])
    return out[..., :VOCAB]                        # tiny fusable static slice


# ------------------------- parameter init / packing --------------------------
def init_params(key):
    ks = jax.random.split(key, 10)
    emb = 0.1 * jax.random.normal(ks[0], (VOCAB, CHAR_DIM), jnp.float32)
    emb = emb.at[0].set(0.0)                                   # padding_idx=0
    return {
        "emb_table": emb,
        "w_c2h": 0.1 * jax.random.normal(ks[1], (CHAR_DIM, HIDDEN_DIM), jnp.float32),
        "ln_gamma": 1.0 + 0.1 * jax.random.normal(ks[8], (HIDDEN_DIM,), jnp.float32),
        "ln_beta": 0.05 * jax.random.normal(ks[9], (HIDDEN_DIM,), jnp.float32),
        # fused conv weights per block: rows = [prev(H)|center(H)|next(H)],
        # cols = [conv1(H)|conv2(H)]
        "wconv": 0.1 * jax.random.normal(ks[2], (3, 3 * HIDDEN_DIM, 2 * HIDDEN_DIM), jnp.float32),
        "bconv": 0.02 * jax.random.normal(ks[3], (3, 2 * HIDDEN_DIM), jnp.float32),
        "fc1": 0.1 * jax.random.normal(ks[4], (3, HIDDEN_DIM, 4 * HIDDEN_DIM), jnp.float32),
        "fc2": 0.1 * jax.random.normal(ks[5], (3, 4 * HIDDEN_DIM, HIDDEN_DIM), jnp.float32),
        "fc_w": 0.1 * jax.random.normal(ks[6], (HIDDEN_DIM, VOCAB), jnp.float32),
        "fc_b": 0.02 * jax.random.normal(ks[7], (VOCAB,), jnp.float32),
    }


def pack_params(p):
    """Offline folding / operand consolidation for the kernel."""
    emb_h = p["emb_table"] @ p["w_c2h"]                        # (V,H) folded
    smalls = jnp.zeros((8 + HIDDEN_DIM, VPAD), jnp.float32)
    smalls = smalls.at[0, :HIDDEN_DIM].set(p["ln_gamma"])
    smalls = smalls.at[1, :HIDDEN_DIM].set(p["ln_beta"])
    smalls = smalls.at[2:5, :2 * HIDDEN_DIM].set(p["bconv"])
    smalls = smalls.at[5, :VOCAB].set(p["fc_b"])
    smalls = smalls.at[8:, :VOCAB].set(p["fc_w"])              # zero-padded cols
    return {"emb_h": emb_h, "wconv": p["wconv"], "fc1": p["fc1"],
            "fc2": p["fc2"], "smalls": smalls}


# --------------------------- pure-JAX reference ------------------------------
def couplet_forward_ref(params, ids, mask):
    H = HIDDEN_DIM
    emb_char = jnp.take(params["emb_table"], ids, axis=0)          # (B,S,C)
    h = emb_char @ params["w_c2h"]
    mu = h.mean(-1, keepdims=True)
    var = ((h - mu) ** 2).mean(-1, keepdims=True)
    x = (h - mu) * jax.lax.rsqrt(var + LN_EPS) * params["ln_gamma"] + params["ln_beta"]
    m = mask[..., None].astype(jnp.float32)
    for blk in range(3):
        w = params["wconv"][blk]                                   # (3H,2H)
        bcv = params["bconv"][blk]                                 # (2H,)
        xp = jnp.pad(x, ((0, 0), (1, 1), (0, 0)))
        conv = xp[:, :-2] @ w[:H] + x @ w[H:2 * H] + xp[:, 2:] @ w[2 * H:] + bcv
        src1 = conv[..., :H]
        src2 = jax.nn.sigmoid(conv[..., H:])
        src = (x * (1.0 - src2) + src1 * src2) * m
        x = jnp.maximum(src @ params["fc1"][blk], 0.0) @ params["fc2"][blk]
    return x @ params["fc_w"] + params["fc_b"]


# ------------------------------- main ----------------------------------------
if __name__ == "__main__":
    key = jax.random.PRNGKey(0)
    kp, ki = jax.random.split(key)
    params = init_params(kp)
    kparams = pack_params(params)

    ids = jax.random.randint(ki, (B, S), 1, VOCAB, dtype=jnp.int32)
    mask = jnp.ones((B, S), jnp.float32).at[1, -2:].set(0.0)   # sample 1: 2 pad steps
    # lengths (= [S, S-2]) are unused on the GCNN path, matching the module.

    logits = couplet_forward(kparams, ids, mask)
    logits = jax.block_until_ready(logits)

    ref = couplet_forward_ref(params, ids, mask)
    assert logits.shape == (B, S, VOCAB)
    max_err = float(jnp.max(jnp.abs(logits - ref)))
    assert jnp.allclose(logits, ref, atol=1e-4, rtol=1e-4), \
        f"mismatch vs reference, max_err={max_err}"

    print("KERNEL_OK")
</pallas_src>

<mosaic_0001>
module attributes {stable_mosaic.version = 11 : i64} {
  func.func @fused_kernel(%arg0: i32, %arg1: memref<16x2xf32, #tpu.memory_space<vmem>>, %arg2: memref<32x32xf32, #tpu.memory_space<vmem>>, %arg3: memref<3x96x64xf32, #tpu.memory_space<vmem>>, %arg4: memref<3x32x128xf32, #tpu.memory_space<vmem>>, %arg5: memref<3x128x32xf32, #tpu.memory_space<vmem>>, %arg6: memref<40x128xf32, #tpu.memory_space<vmem>>, %arg7: memref<2x8x128xf32, #tpu.memory_space<vmem>>) attributes {dimension_semantics = [#tpu.dimension_semantics<parallel>], iteration_bounds = array<i64: 1>, scalar_prefetch = 0 : i64, scratch_operands = 0 : i64, tpu.core_type = #tpu.core_type<tc>, window_params = [{transform_indices = @transform_0, window_bounds = array<i64: 16, 2>}, {pipeline_mode = #tpu.pipeline_mode<synchronous>, transform_indices = @transform_1, window_bounds = array<i64: 32, 32>}, {pipeline_mode = #tpu.pipeline_mode<synchronous>, transform_indices = @transform_2, window_bounds = array<i64: 3, 96, 64>}, {pipeline_mode = #tpu.pipeline_mode<synchronous>, transform_indices = @transform_3, window_bounds = array<i64: 3, 32, 128>}, {pipeline_mode = #tpu.pipeline_mode<synchronous>, transform_indices = @transform_4, window_bounds = array<i64: 3, 128, 32>}, {pipeline_mode = #tpu.pipeline_mode<synchronous>, transform_indices = @transform_5, window_bounds = array<i64: 40, 128>}, {transform_indices = @transform_6, window_bounds = array<i64: 2, 8, 128>}]} {
    %c0 = arith.constant 0 : index
    %c0_0 = arith.constant 0 : index
    %0 = vector.load %arg1[%c0, %c0_0] : memref<16x2xf32, #tpu.memory_space<vmem>>, vector<16x1xf32>
    %1 = arith.fptosi %0 : vector<16x1xf32> to vector<16x1xi32>
    %c0_1 = arith.constant 0 : index
    %c1 = arith.constant 1 : index
    %2 = vector.load %arg1[%c0_1, %c1] : memref<16x2xf32, #tpu.memory_space<vmem>>, vector<16x1xf32>
    %3 = tpu.iota {dimensions = array<i32: 1>} : vector<16x32xi32>
    %4 = vector.broadcast %1 : vector<16x1xi32> to vector<16x32xi32>
    %5 = arith.cmpi eq, %3, %4 : vector<16x32xi32>
    %6 = arith.extui %5 : vector<16x32xi1> to vector<16x32xi32>
    %7 = arith.sitofp %6 : vector<16x32xi32> to vector<16x32xf32>
    %c0_2 = arith.constant 0 : index
    %c0_3 = arith.constant 0 : index
    %8 = vector.load %arg2[%c0_2, %c0_3] : memref<32x32xf32, #tpu.memory_space<vmem>>, vector<32x32xf32>
    %cst = arith.constant dense<0.000000e+00> : vector<16x32xf32>
    %9 = tpu.matmul %7, %8, %cst {dimension_numbers = #tpu.dot_dimension_numbers<[1], [0], [0], [1], [0, 0, 1, 1], [], []>} : vector<16x32xf32>, vector<32x32xf32>, vector<16x32xf32> -> vector<16x32xf32>
    %c0_4 = arith.constant 0 : index
    %c0_5 = arith.constant 0 : index
    %10 = vector.load %arg6[%c0_4, %c0_5] : memref<40x128xf32, #tpu.memory_space<vmem>>, vector<1x32xf32>
    %c1_6 = arith.constant 1 : index
    %c0_7 = arith.constant 0 : index
    %11 = vector.load %arg6[%c1_6, %c0_7] : memref<40x128xf32, #tpu.memory_space<vmem>>, vector<1x32xf32>
    %cst_8 = arith.constant dense<0.000000e+00> : vector<16xf32>
    %12 = vector.multi_reduction <add>, %9, %cst_8 [1] : vector<16x32xf32> to vector<16xf32>
    %13 = vector.shape_cast %12 : vector<16xf32> to vector<16x1xf32>
    %cst_9 = arith.constant 3.200000e+01 : f32
    %14 = vector.broadcast %cst_9 : f32 to vector<16x1xf32>
    %15 = arith.divf %13, %14 : vector<16x1xf32>
    %16 = vector.broadcast %15 : vector<16x1xf32> to vector<16x32xf32>
    %17 = arith.subf %9, %16 : vector<16x32xf32>
    %18 = arith.mulf %17, %17 : vector<16x32xf32>
    %cst_10 = arith.constant dense<0.000000e+00> : vector<16xf32>
    %19 = vector.multi_reduction <add>, %18, %cst_10 [1] : vector<16x32xf32> to vector<16xf32>
    %20 = vector.shape_cast %19 : vector<16xf32> to vector<16x1xf32>
    %cst_11 = arith.constant 3.200000e+01 : f32
    %21 = vector.broadcast %cst_11 : f32 to vector<16x1xf32>
    %22 = arith.divf %20, %21 : vector<16x1xf32>
    %23 = vector.broadcast %15 : vector<16x1xf32> to vector<16x32xf32>
    %24 = arith.subf %9, %23 : vector<16x32xf32>
    %cst_12 = arith.constant 9.99999974E-6 : f32
    %25 = vector.broadcast %cst_12 : f32 to vector<16x1xf32>
    %26 = arith.addf %22, %25 : vector<16x1xf32>
    %27 = math.rsqrt %26 : vector<16x1xf32>
    %28 = vector.broadcast %27 : vector<16x1xf32> to vector<16x32xf32>
    %29 = arith.mulf %24, %28 : vector<16x32xf32>
    %30 = vector.broadcast %10 : vector<1x32xf32> to vector<16x32xf32>
    %31 = arith.mulf %29, %30 : vector<16x32xf32>
    %32 = vector.broadcast %11 : vector<1x32xf32> to vector<16x32xf32>
    %33 = arith.addf %31, %32 : vector<16x32xf32>
    %34 = tpu.iota {dimensions = array<i32: 0>} : vector<16x32xi32>
    %35 = arith.sitofp %34 : vector<16x32xi32> to vector<16x32xf32>
    %cst_13 = arith.constant 1.250000e-01 : f32
    %36 = vector.broadcast %cst_13 : f32 to vector<16x32xf32>
    %37 = arith.mulf %35, %36 : vector<16x32xf32>
    %38 = math.floor %37 : vector<16x32xf32>
    %cst_14 = arith.constant 8.000000e+00 : f32
    %39 = vector.broadcast %cst_14 : f32 to vector<16x32xf32>
    %40 = arith.mulf %38, %39 : vector<16x32xf32>
    %41 = arith.subf %35, %40 : vector<16x32xf32>
    %cst_15 = arith.constant 5.000000e-01 : f32
    %42 = vector.broadcast %cst_15 : f32 to vector<16x32xf32>
    %43 = arith.cmpf ogt, %41, %42 : vector<16x32xf32>
    %44 = arith.extui %43 : vector<16x32xi1> to vector<16x32xi32>
    %45 = arith.sitofp %44 : vector<16x32xi32> to vector<16x32xf32>
    %cst_16 = arith.constant 6.500000e+00 : f32
    %46 = vector.broadcast %cst_16 : f32 to vector<16x32xf32>
    %47 = arith.cmpf olt, %41, %46 : vector<16x32xf32>
    %48 = arith.extui %47 : vector<16x32xi1> to vector<16x32xi32>
    %49 = arith.sitofp %48 : vector<16x32xi32> to vector<16x32xf32>
    %c0_17 = arith.constant 0 : index
    %c0_18 = arith.constant 0 : index
    %c0_19 = arith.constant 0 : index
    %50 = vector.load %arg3[%c0_17, %c0_18, %c0_19] : memref<3x96x64xf32, #tpu.memory_space<vmem>>, vector<1x96x64xf32>
    %51 = vector.shape_cast %50 : vector<1x96x64xf32> to vector<96x64xf32>
    %c2 = arith.constant 2 : index
    %c0_20 = arith.constant 0 : index
    %52 = vector.load %arg6[%c2, %c0_20] : memref<40x128xf32, #tpu.memory_space<vmem>>, vector<1x64xf32>
    %c1_i32 = arith.constant 1 : i32
    %53 = tpu.dynamic_rotate %33 by %c1_i32 dim 0 : vector<16x32xf32>, i32 -> vector<16x32xf32>
    %54 = arith.mulf %53, %45 : vector<16x32xf32>
    %c15_i32 = arith.constant 15 : i32
    %55 = tpu.dynamic_rotate %33 by %c15_i32 dim 0 : vector<16x32xf32>, i32 -> vector<16x32xf32>
    %56 = arith.mulf %55, %49 : vector<16x32xf32>
    %57 = vector.extract_strided_slice %51 {offsets = [0, 0], sizes = [32, 64], strides = [1, 1]} : vector<96x64xf32> to vector<32x64xf32>
    %cst_21 = arith.constant dense<0.000000e+00> : vector<16x64xf32>
    %58 = tpu.matmul %54, %57, %cst_21 {dimension_numbers = #tpu.dot_dimension_numbers<[1], [0], [0], [1], [0, 0, 1, 1], [], []>} : vector<16x32xf32>, vector<32x64xf32>, vector<16x64xf32> -> vector<16x64xf32>
    %59 = vector.extract_strided_slice %51 {offsets = [32, 0], sizes = [32, 64], strides = [1, 1]} : vector<96x64xf32> to vector<32x64xf32>
    %cst_22 = arith.constant dense<0.000000e+00> : vector<16x64xf32>
    %60 = tpu.matmul %33, %59, %cst_22 {dimension_numbers = #tpu.dot_dimension_numbers<[1], [0], [0], [1], [0, 0, 1, 1], [], []>} : vector<16x32xf32>, vector<32x64xf32>, vector<16x64xf32> -> vector<16x64xf32>
    %61 = arith.addf %58, %60 : vector<16x64xf32>
    %62 = vector.extract_strided_slice %51 {offsets = [64, 0], sizes = [32, 64], strides = [1, 1]} : vector<96x64xf32> to vector<32x64xf32>
    %cst_23 = arith.constant dense<0.000000e+00> : vector<16x64xf32>
    %63 = tpu.matmul %56, %62, %cst_23 {dimension_numbers = #tpu.dot_dimension_numbers<[1], [0], [0], [1], [0, 0, 1, 1], [], []>} : vector<16x32xf32>, vector<32x64xf32>, vector<16x64xf32> -> vector<16x64xf32>
    %64 = arith.addf %61, %63 : vector<16x64xf32>
    %65 = vector.broadcast %52 : vector<1x64xf32> to vector<16x64xf32>
    %66 = arith.addf %64, %65 : vector<16x64xf32>
    %67 = vector.extract_strided_slice %66 {offsets = [0, 0], sizes = [16, 32], strides = [1, 1]} : vector<16x64xf32> to vector<16x32xf32>
    %68 = vector.extract_strided_slice %66 {offsets = [0, 32], sizes = [16, 32], strides = [1, 1]} : vector<16x64xf32> to vector<16x32xf32>
    %69 = arith.negf %68 : vector<16x32xf32>
    %70 = math.exp %69 : vector<16x32xf32>
    %cst_24 = arith.constant 1.000000e+00 : f32
    %71 = vector.broadcast %cst_24 : f32 to vector<16x32xf32>
    %72 = arith.addf %71, %70 : vector<16x32xf32>
    %73 = arith.divf %71, %72 : vector<16x32xf32>
    %74 = arith.subf %67, %33 : vector<16x32xf32>
    %75 = arith.mulf %73, %74 : vector<16x32xf32>
    %76 = arith.addf %33, %75 : vector<16x32xf32>
    %77 = vector.broadcast %2 : vector<16x1xf32> to vector<16x32xf32>
    %78 = arith.mulf %76, %77 : vector<16x32xf32>
    %c0_25 = arith.constant 0 : index
    %c0_26 = arith.constant 0 : index
    %c0_27 = arith.constant 0 : index
    %79 = vector.load %arg4[%c0_25, %c0_26, %c0_27] : memref<3x32x128xf32, #tpu.memory_space<vmem>>, vector<1x32x128xf32>
    %80 = vector.shape_cast %79 : vector<1x32x128xf32> to vector<32x128xf32>
    %cst_28 = arith.constant dense<0.000000e+00> : vector<16x128xf32>
    %81 = tpu.matmul %78, %80, %cst_28 {dimension_numbers = #tpu.dot_dimension_numbers<[1], [0], [0], [1], [0, 0, 1, 1], [], []>} : vector<16x32xf32>, vector<32x128xf32>, vector<16x128xf32> -> vector<16x128xf32>
    %cst_29 = arith.constant 0.000000e+00 : f32
    %82 = vector.broadcast %cst_29 : f32 to vector<16x128xf32>
    %83 = arith.maximumf %81, %82 : vector<16x128xf32>
    %c0_30 = arith.constant 0 : index
    %c0_31 = arith.constant 0 : index
    %c0_32 = arith.constant 0 : index
    %84 = vector.load %arg5[%c0_30, %c0_31, %c0_32] : memref<3x128x32xf32, #tpu.memory_space<vmem>>, vector<1x128x32xf32>
    %85 = vector.shape_cast %84 : vector<1x128x32xf32> to vector<128x32xf32>
    %cst_33 = arith.constant dense<0.000000e+00> : vector<16x32xf32>
    %86 = tpu.matmul %83, %85, %cst_33 {dimension_numbers = #tpu.dot_dimension_numbers<[1], [0], [0], [1], [0, 0, 1, 1], [], []>} : vector<16x128xf32>, vector<128x32xf32>, vector<16x32xf32> -> vector<16x32xf32>
    %c1_34 = arith.constant 1 : index
    %c0_35 = arith.constant 0 : index
    %c0_36 = arith.constant 0 : index
    %87 = vector.load %arg3[%c1_34, %c0_35, %c0_36] : memref<3x96x64xf32, #tpu.memory_space<vmem>>, vector<1x96x64xf32>
    %88 = vector.shape_cast %87 : vector<1x96x64xf32> to vector<96x64xf32>
    %c3 = arith.constant 3 : index
    %c0_37 = arith.constant 0 : index
    %89 = vector.load %arg6[%c3, %c0_37] : memref<40x128xf32, #tpu.memory_space<vmem>>, vector<1x64xf32>
    %c1_i32_38 = arith.constant 1 : i32
    %90 = tpu.dynamic_rotate %86 by %c1_i32_38 dim 0 : vector<16x32xf32>, i32 -> vector<16x32xf32>
    %91 = arith.mulf %90, %45 : vector<16x32xf32>
    %c15_i32_39 = arith.constant 15 : i32
    %92 = tpu.dynamic_rotate %86 by %c15_i32_39 dim 0 : vector<16x32xf32>, i32 -> vector<16x32xf32>
    %93 = arith.mulf %92, %49 : vector<16x32xf32>
    %94 = vector.extract_strided_slice %88 {offsets = [0, 0], sizes = [32, 64], strides = [1, 1]} : vector<96x64xf32> to vector<32x64xf32>
    %cst_40 = arith.constant dense<0.000000e+00> : vector<16x64xf32>
    %95 = tpu.matmul %91, %94, %cst_40 {dimension_numbers = #tpu.dot_dimension_numbers<[1], [0], [0], [1], [0, 0, 1, 1], [], []>} : vector<16x32xf32>, vector<32x64xf32>, vector<16x64xf32> -> vector<16x64xf32>
    %96 = vector.extract_strided_slice %88 {offsets = [32, 0], sizes = [32, 64], strides = [1, 1]} : vector<96x64xf32> to vector<32x64xf32>
    %cst_41 = arith.constant dense<0.000000e+00> : vector<16x64xf32>
    %97 = tpu.matmul %86, %96, %cst_41 {dimension_numbers = #tpu.dot_dimension_numbers<[1], [0], [0], [1], [0, 0, 1, 1], [], []>} : vector<16x32xf32>, vector<32x64xf32>, vector<16x64xf32> -> vector<16x64xf32>
    %98 = arith.addf %95, %97 : vector<16x64xf32>
    %99 = vector.extract_strided_slice %88 {offsets = [64, 0], sizes = [32, 64], strides = [1, 1]} : vector<96x64xf32> to vector<32x64xf32>
    %cst_42 = arith.constant dense<0.000000e+00> : vector<16x64xf32>
    %100 = tpu.matmul %93, %99, %cst_42 {dimension_numbers = #tpu.dot_dimension_numbers<[1], [0], [0], [1], [0, 0, 1, 1], [], []>} : vector<16x32xf32>, vector<32x64xf32>, vector<16x64xf32> -> vector<16x64xf32>
    %101 = arith.addf %98, %100 : vector<16x64xf32>
    %102 = vector.broadcast %89 : vector<1x64xf32> to vector<16x64xf32>
    %103 = arith.addf %101, %102 : vector<16x64xf32>
    %104 = vector.extract_strided_slice %103 {offsets = [0, 0], sizes = [16, 32], strides = [1, 1]} : vector<16x64xf32> to vector<16x32xf32>
    %105 = vector.extract_strided_slice %103 {offsets = [0, 32], sizes = [16, 32], strides = [1, 1]} : vector<16x64xf32> to vector<16x32xf32>
    %106 = arith.negf %105 : vector<16x32xf32>
    %107 = math.exp %106 : vector<16x32xf32>
    %cst_43 = arith.constant 1.000000e+00 : f32
    %108 = vector.broadcast %cst_43 : f32 to vector<16x32xf32>
    %109 = arith.addf %108, %107 : vector<16x32xf32>
    %110 = arith.divf %108, %109 : vector<16x32xf32>
    %111 = arith.subf %104, %86 : vector<16x32xf32>
    %112 = arith.mulf %110, %111 : vector<16x32xf32>
    %113 = arith.addf %86, %112 : vector<16x32xf32>
    %114 = vector.broadcast %2 : vector<16x1xf32> to vector<16x32xf32>
    %115 = arith.mulf %113, %114 : vector<16x32xf32>
    %c1_44 = arith.constant 1 : index
    %c0_45 = arith.constant 0 : index
    %c0_46 = arith.constant 0 : index
    %116 = vector.load %arg4[%c1_44, %c0_45, %c0_46] : memref<3x32x128xf32, #tpu.memory_space<vmem>>, vector<1x32x128xf32>
    %117 = vector.shape_cast %116 : vector<1x32x128xf32> to vector<32x128xf32>
    %cst_47 = arith.constant dense<0.000000e+00> : vector<16x128xf32>
    %118 = tpu.matmul %115, %117, %cst_47 {dimension_numbers = #tpu.dot_dimension_numbers<[1], [0], [0], [1], [0, 0, 1, 1], [], []>} : vector<16x32xf32>, vector<32x128xf32>, vector<16x128xf32> -> vector<16x128xf32>
    %cst_48 = arith.constant 0.000000e+00 : f32
    %119 = vector.broadcast %cst_48 : f32 to vector<16x128xf32>
    %120 = arith.maximumf %118, %119 : vector<16x128xf32>
    %c1_49 = arith.constant 1 : index
    %c0_50 = arith.constant 0 : index
    %c0_51 = arith.constant 0 : index
    %121 = vector.load %arg5[%c1_49, %c0_50, %c0_51] : memref<3x128x32xf32, #tpu.memory_space<vmem>>, vector<1x128x32xf32>
    %122 = vector.shape_cast %121 : vector<1x128x32xf32> to vector<128x32xf32>
    %cst_52 = arith.constant dense<0.000000e+00> : vector<16x32xf32>
    %123 = tpu.matmul %120, %122, %cst_52 {dimension_numbers = #tpu.dot_dimension_numbers<[1], [0], [0], [1], [0, 0, 1, 1], [], []>} : vector<16x128xf32>, vector<128x32xf32>, vector<16x32xf32> -> vector<16x32xf32>
    %c2_53 = arith.constant 2 : index
    %c0_54 = arith.constant 0 : index
    %c0_55 = arith.constant 0 : index
    %124 = vector.load %arg3[%c2_53, %c0_54, %c0_55] : memref<3x96x64xf32, #tpu.memory_space<vmem>>, vector<1x96x64xf32>
    %125 = vector.shape_cast %124 : vector<1x96x64xf32> to vector<96x64xf32>
    %c4 = arith.constant 4 : index
    %c0_56 = arith.constant 0 : index
    %126 = vector.load %arg6[%c4, %c0_56] : memref<40x128xf32, #tpu.memory_space<vmem>>, vector<1x64xf32>
    %c1_i32_57 = arith.constant 1 : i32
    %127 = tpu.dynamic_rotate %123 by %c1_i32_57 dim 0 : vector<16x32xf32>, i32 -> vector<16x32xf32>
    %128 = arith.mulf %127, %45 : vector<16x32xf32>
    %c15_i32_58 = arith.constant 15 : i32
    %129 = tpu.dynamic_rotate %123 by %c15_i32_58 dim 0 : vector<16x32xf32>, i32 -> vector<16x32xf32>
    %130 = arith.mulf %129, %49 : vector<16x32xf32>
    %131 = vector.extract_strided_slice %125 {offsets = [0, 0], sizes = [32, 64], strides = [1, 1]} : vector<96x64xf32> to vector<32x64xf32>
    %cst_59 = arith.constant dense<0.000000e+00> : vector<16x64xf32>
    %132 = tpu.matmul %128, %131, %cst_59 {dimension_numbers = #tpu.dot_dimension_numbers<[1], [0], [0], [1], [0, 0, 1, 1], [], []>} : vector<16x32xf32>, vector<32x64xf32>, vector<16x64xf32> -> vector<16x64xf32>
    %133 = vector.extract_strided_slice %125 {offsets = [32, 0], sizes = [32, 64], strides = [1, 1]} : vector<96x64xf32> to vector<32x64xf32>
    %cst_60 = arith.constant dense<0.000000e+00> : vector<16x64xf32>
    %134 = tpu.matmul %123, %133, %cst_60 {dimension_numbers = #tpu.dot_dimension_numbers<[1], [0], [0], [1], [0, 0, 1, 1], [], []>} : vector<16x32xf32>, vector<32x64xf32>, vector<16x64xf32> -> vector<16x64xf32>
    %135 = arith.addf %132, %134 : vector<16x64xf32>
    %136 = vector.extract_strided_slice %125 {offsets = [64, 0], sizes = [32, 64], strides = [1, 1]} : vector<96x64xf32> to vector<32x64xf32>
    %cst_61 = arith.constant dense<0.000000e+00> : vector<16x64xf32>
    %137 = tpu.matmul %130, %136, %cst_61 {dimension_numbers = #tpu.dot_dimension_numbers<[1], [0], [0], [1], [0, 0, 1, 1], [], []>} : vector<16x32xf32>, vector<32x64xf32>, vector<16x64xf32> -> vector<16x64xf32>
    %138 = arith.addf %135, %137 : vector<16x64xf32>
    %139 = vector.broadcast %126 : vector<1x64xf32> to vector<16x64xf32>
    %140 = arith.addf %138, %139 : vector<16x64xf32>
    %141 = vector.extract_strided_slice %140 {offsets = [0, 0], sizes = [16, 32], strides = [1, 1]} : vector<16x64xf32> to vector<16x32xf32>
    %142 = vector.extract_strided_slice %140 {offsets = [0, 32], sizes = [16, 32], strides = [1, 1]} : vector<16x64xf32> to vector<16x32xf32>
    %143 = arith.negf %142 : vector<16x32xf32>
    %144 = math.exp %143 : vector<16x32xf32>
    %cst_62 = arith.constant 1.000000e+00 : f32
    %145 = vector.broadcast %cst_62 : f32 to vector<16x32xf32>
    %146 = arith.addf %145, %144 : vector<16x32xf32>
    %147 = arith.divf %145, %146 : vector<16x32xf32>
    %148 = arith.subf %141, %123 : vector<16x32xf32>
    %149 = arith.mulf %147, %148 : vector<16x32xf32>
    %150 = arith.addf %123, %149 : vector<16x32xf32>
    %151 = vector.broadcast %2 : vector<16x1xf32> to vector<16x32xf32>
    %152 = arith.mulf %150, %151 : vector<16x32xf32>
    %c2_63 = arith.constant 2 : index
    %c0_64 = arith.constant 0 : index
    %c0_65 = arith.constant 0 : index
    %153 = vector.load %arg4[%c2_63, %c0_64, %c0_65] : memref<3x32x128xf32, #tpu.memory_space<vmem>>, vector<1x32x128xf32>
    %154 = vector.shape_cast %153 : vector<1x32x128xf32> to vector<32x128xf32>
    %cst_66 = arith.constant dense<0.000000e+00> : vector<16x128xf32>
    %155 = tpu.matmul %152, %154, %cst_66 {dimension_numbers = #tpu.dot_dimension_numbers<[1], [0], [0], [1], [0, 0, 1, 1], [], []>} : vector<16x32xf32>, vector<32x128xf32>, vector<16x128xf32> -> vector<16x128xf32>
    %cst_67 = arith.constant 0.000000e+00 : f32
    %156 = vector.broadcast %cst_67 : f32 to vector<16x128xf32>
    %157 = arith.maximumf %155, %156 : vector<16x128xf32>
    %c2_68 = arith.constant 2 : index
    %c0_69 = arith.constant 0 : index
    %c0_70 = arith.constant 0 : index
    %158 = vector.load %arg5[%c2_68, %c0_69, %c0_70] : memref<3x128x32xf32, #tpu.memory_space<vmem>>, vector<1x128x32xf32>
    %159 = vector.shape_cast %158 : vector<1x128x32xf32> to vector<128x32xf32>
    %cst_71 = arith.constant dense<0.000000e+00> : vector<16x32xf32>
    %160 = tpu.matmul %157, %159, %cst_71 {dimension_numbers = #tpu.dot_dimension_numbers<[1], [0], [0], [1], [0, 0, 1, 1], [], []>} : vector<16x128xf32>, vector<128x32xf32>, vector<16x32xf32> -> vector<16x32xf32>
    %c8 = arith.constant 8 : index
    %c0_72 = arith.constant 0 : index
    %161 = vector.load %arg6[%c8, %c0_72] : memref<40x128xf32, #tpu.memory_space<vmem>>, vector<32x128xf32>
    %c5 = arith.constant 5 : index
    %c0_73 = arith.constant 0 : index
    %162 = vector.load %arg6[%c5, %c0_73] : memref<40x128xf32, #tpu.memory_space<vmem>>, vector<1x128xf32>
    %cst_74 = arith.constant dense<0.000000e+00> : vector<16x128xf32>
    %163 = tpu.matmul %160, %161, %cst_74 {dimension_numbers = #tpu.dot_dimension_numbers<[1], [0], [0], [1], [0, 0, 1, 1], [], []>} : vector<16x32xf32>, vector<32x128xf32>, vector<16x128xf32> -> vector<16x128xf32>
    %164 = vector.broadcast %162 : vector<1x128xf32> to vector<16x128xf32>
    %165 = arith.addf %163, %164 : vector<16x128xf32>
    %166 = vector.extract_strided_slice %165 {offsets = [0, 0], sizes = [8, 128], strides = [1, 1]} : vector<16x128xf32> to vector<8x128xf32>
    %c0_75 = arith.constant 0 : index
    %c0_76 = arith.constant 0 : index
    %c0_77 = arith.constant 0 : index
    %167 = vector.load %arg7[%c0_75, %c0_76, %c0_77] : memref<2x8x128xf32, #tpu.memory_space<vmem>>, vector<1x8x128xf32>
    %168 = vector.shape_cast %167 : vector<1x8x128xf32> to vector<8x128xf32>
    %169 = vector.shape_cast %166 : vector<8x128xf32> to vector<1x8x128xf32>
    tpu.vector_store %arg7[%c0_75, %c0_76, %c0_77], %169 {strides = array<i32>} : memref<2x8x128xf32, #tpu.memory_space<vmem>>, vector<1x8x128xf32>,
    %170 = vector.extract_strided_slice %165 {offsets = [8, 0], sizes = [8, 128], strides = [1, 1]} : vector<16x128xf32> to vector<8x128xf32>
    %c1_78 = arith.constant 1 : index
    %c0_79 = arith.constant 0 : index
    %c0_80 = arith.constant 0 : index
    %171 = vector.load %arg7[%c1_78, %c0_79, %c0_80] : memref<2x8x128xf32, #tpu.memory_space<vmem>>, vector<1x8x128xf32>
    %172 = vector.shape_cast %171 : vector<1x8x128xf32> to vector<8x128xf32>
    %173 = vector.shape_cast %170 : vector<8x128xf32> to vector<1x8x128xf32>
    tpu.vector_store %arg7[%c1_78, %c0_79, %c0_80], %173 {strides = array<i32>} : memref<2x8x128xf32, #tpu.memory_space<vmem>>, vector<1x8x128xf32>,
    return
  }
  func.func @transform_0(%arg0: i32) -> (i32, i32) {
    %c0_i32 = arith.constant 0 : i32
    %c0_i32_0 = arith.constant 0 : i32
    return %arg0, %c0_i32 : i32, i32
  }
  func.func @transform_1(%arg0: i32) -> (i32, i32) {
    %c0_i32 = arith.constant 0 : i32
    %c0_i32_0 = arith.constant 0 : i32
    %c0_i32_1 = arith.constant 0 : i32
    return %c0_i32, %c0_i32_0 : i32, i32
  }
  func.func @transform_2(%arg0: i32) -> (i32, i32, i32) {
    %c0_i32 = arith.constant 0 : i32
    %c0_i32_0 = arith.constant 0 : i32
    %c0_i32_1 = arith.constant 0 : i32
    %c0_i32_2 = arith.constant 0 : i32
    return %c0_i32, %c0_i32_0, %c0_i32_1 : i32, i32, i32
  }
  func.func @transform_3(%arg0: i32) -> (i32, i32, i32) {
    %c0_i32 = arith.constant 0 : i32
    %c0_i32_0 = arith.constant 0 : i32
    %c0_i32_1 = arith.constant 0 : i32
    %c0_i32_2 = arith.constant 0 : i32
    return %c0_i32, %c0_i32_0, %c0_i32_1 : i32, i32, i32
  }
  func.func @transform_4(%arg0: i32) -> (i32, i32, i32) {
    %c0_i32 = arith.constant 0 : i32
    %c0_i32_0 = arith.constant 0 : i32
    %c0_i32_1 = arith.constant 0 : i32
    %c0_i32_2 = arith.constant 0 : i32
    return %c0_i32, %c0_i32_0, %c0_i32_1 : i32, i32, i32
  }
  func.func @transform_5(%arg0: i32) -> (i32, i32) {
    %c0_i32 = arith.constant 0 : i32
    %c0_i32_0 = arith.constant 0 : i32
    %c0_i32_1 = arith.constant 0 : i32
    return %c0_i32, %c0_i32_0 : i32, i32
  }
  func.func @transform_6(%arg0: i32) -> (i32, i32, i32) {
    %c0_i32 = arith.constant 0 : i32
    %c0_i32_0 = arith.constant 0 : i32
    %c0_i32_1 = arith.constant 0 : i32
    return %arg0, %c0_i32, %c0_i32_0 : i32, i32, i32
  }
}

</mosaic_0001>

<llo_original>
// kernel: couplet_forward.1
$region0: #{couplet_forward.1}
  #allocation0 [shape = 'u32[]', space=smem, size = 0x4, offset = 0x4, fixed_abs, tag = 'smem constant byte address 0x4 - core index']
  #allocation1 [shape = 'u32[144,128]{1,0:T(1,128)}', space=vmem, size = 0x12000, scoped, tag = 'internal scratch']
  %s0 = inlined_call_operand.vmem [shape: f32[16,2], index: 0, kind: input, shape index: {}]
  %s1 = inlined_call_operand.vmem [shape: f32[32,32], index: 1, kind: input, shape index: {}]
  %s2 = inlined_call_operand.vmem [shape: f32[3,96,64], index: 2, kind: input, shape index: {}]
  %s3 = inlined_call_operand.vmem [shape: f32[3,32,128], index: 3, kind: input, shape index: {}]
  %s4 = inlined_call_operand.vmem [shape: f32[3,128,32], index: 4, kind: input, shape index: {}]
  %s5 = inlined_call_operand.vmem [shape: f32[40,128], index: 5, kind: input, shape index: {}]
  %s6 = inlined_call_operand.hbm [shape: f32[2,8,128], index: 6, kind: output, shape index: {}]
  %s7 = sld [smem:[#allocation0]]
  $region34: #{couplet_forward.1} parent=0
    _
  %s9 = ssub.s32 1, %s7
  %s10 = scalar_select 0, %s9, %s7
  $region1: #{couplet_forward.1} parent=0
    #allocation2 [shape = 'u8[8192]{0}', space=vmem, size = 0x2000, scoped, tag = 'output window, operand 0, single buffered']
    #allocation3 [shape = 's32[1]{0}', space=sflag, size = 0x4, scoped, tag = 'scoped memory for couplet_forward.1']
    %11 = vsyncpa [#allocation3], 0
    // Predicated region
    $region2: #{couplet_forward.1} parent=1 // pred_check
      _
    $region3: #{couplet_forward.1} parent=1 // pred_check_branch
      %13 = sbr.rel (0) target = $region5
    $region4: #{couplet_forward.1} parent=1 // pred_region
      _
    $region5: #{couplet_forward.1} parent=1 // pred_fallthru
      _
    // Predicated region
    $region6: #{couplet_forward.1} parent=1 // pred_check
      _
    $region7: #{couplet_forward.1} parent=1 // pred_check_branch
      %15 = sbr.rel (0) target = $region9
    $region8: #{couplet_forward.1} parent=1 // pred_region
      _
    $region9: #{couplet_forward.1} parent=1 // pred_fallthru
      _
    // Predicated region
    $region10: #{couplet_forward.1} parent=1 // pred_check
      _
    $region11: #{couplet_forward.1} parent=1 // pred_check_branch
      %17 = sbr.rel (0) target = $region13
    $region12: #{couplet_forward.1} parent=1 // pred_region
      _
    $region13: #{couplet_forward.1} parent=1 // pred_fallthru
      _
    // Predicated region
    $region14: #{couplet_forward.1} parent=1 // pred_check
      _
    $region15: #{couplet_forward.1} parent=1 // pred_check_branch
      %19 = sbr.rel (0) target = $region17
    $region16: #{couplet_forward.1} parent=1 // pred_region
      _
    $region17: #{couplet_forward.1} parent=1 // pred_fallthru
      _
    // Predicated region
    $region18: #{couplet_forward.1} parent=1 // pred_check
      _
    $region19: #{couplet_forward.1} parent=1 // pred_check_branch
      %21 = sbr.rel (0) target = $region21
    $region20: #{couplet_forward.1} parent=1 // pred_region
      _
    $region21: #{couplet_forward.1} parent=1 // pred_fallthru
      _
    // Predicated region
    $region22: #{couplet_forward.1} parent=1 // pred_check
      _
    $region23: #{couplet_forward.1} parent=1 // pred_check_branch
      %23 = sbr.rel (0) target = $region25
    $region24: #{couplet_forward.1} parent=1 // pred_region
      _
    $region25: #{couplet_forward.1} parent=1 // pred_fallthru
      _
    %v24 = vld [vmem:[%s0] sm:$0xff]
    %v25 = vld [vmem:[%s0 + $0x8] sm:$0xff]
    %v26 = vcvt.f32.s32.to.zero.pseudo %v24
    %v27 = vcvt.f32.s32.to.zero.pseudo %v25
    %v28 = vlaneseq
    %v29 = vand.u32 %v28, 127
    %30 = vset.pattern.permute.xlu0 0
    %31 = vperm.xlu0 %30, %v26
    %v32 = vpop.permute.xlu0 %31
    %33 = vset.pattern.permute.xlu0 0
    %34 = vperm.xlu0 %33, %v27
    %v35 = vpop.permute.xlu0 %34
    %vm36 = vcmp.eq.s32.totalorder %v29, %v32
    %vm37 = vcmp.eq.s32.totalorder %v29, %v35
    %v38 = vsel %vm36, 1, 0
    %v39 = vsel %vm37, 1, 0
    %v40 = vcvt.s32.f32 %v38
    %v41 = vcvt.s32.f32 %v39
    %v42 = vld [vmem:[%s1] sm:$0xff]
    %v43 = vld [vmem:[%s1 + $0x8] sm:$0xff]
    %v44 = vld [vmem:[%s1 + $0x10] sm:$0xff]
    %v45 = vld [vmem:[%s1 + $0x18] sm:$0xff]
    %vm46 = vcmask 261120
    %v48 = vsel %vm46, %v40, 0
    %v51 = vsel %vm46, %v41, 0
    %53 = vmatprep.subr.mxu0 0.0
    %54 = vmatpush1.msra.mxu0 0.0
    %55 = vmatprep.subr.mxu0 0.0
    %56 = vmatpush1.msra.mxu0 0.0
    %57 = vmatprep.subr.mxu0 0.0
    %58 = vmatpush1.msra.mxu0 0.0
    %59 = vmatprep.subr.mxu0 0.0
    %60 = vmatpush1.msra.mxu0 0.0
    %61 = vmatprep.subr.mxu0 0.0
    %62 = vmatpush1.msra.mxu0 0.0
    %63 = vmatprep.subr.mxu0 0.0
    %64 = vmatpush1.msra.mxu0 0.0
    %65 = vmatprep.subr.mxu0 0.0
    %66 = vmatpush1.msra.mxu0 0.0
    %67 = vmatprep.subr.mxu0 0.0
    %68 = vmatpush1.msra.mxu0 0.0
    %69 = vmatprep.subr.mxu0 0.0
    %70 = vmatpush1.msra.mxu0 0.0
    %71 = vmatprep.subr.mxu0 0.0
    %72 = vmatpush1.msra.mxu0 0.0
    %73 = vmatprep.subr.mxu0 0.0
    %74 = vmatpush1.msra.mxu0 0.0
    %75 = vmatprep.subr.mxu0 0.0
    %76 = vmatpush1.msra.mxu0 0.0
    %77 = vmatprep.subr.mxu0 0.0
    %78 = vmatpush1.msra.mxu0 %v45
    %79 = vmatprep.subr.mxu0 0.0
    %80 = vmatpush1.msra.mxu0 %v44
    %81 = vmatprep.subr.mxu0 0.0
    %82 = vmatpush1.msra.mxu0 %v43
    %83 = vmatprep.subr.mxu0 0.0
    %84 = vmatpush1.msra.mxu0 %v42
    %85 = vmatprep.subr.mxu0 0.0
    %86 = vmatpush2.msra.mxu0 0.0
    %87 = vmatprep.subr.mxu0 0.0
    %88 = vmatpush2.msra.mxu0 0.0
    %89 = vmatprep.subr.mxu0 0.0
    %90 = vmatpush2.msra.mxu0 0.0
    %91 = vmatprep.subr.mxu0 0.0
    %92 = vmatpush2.msra.mxu0 0.0
    %93 = vmatprep.subr.mxu0 0.0
    %94 = vmatpush2.msra.mxu0 0.0
    %95 = vmatprep.subr.mxu0 0.0
    %96 = vmatpush2.msra.mxu0 0.0
    %97 = vmatprep.subr.mxu0 0.0
    %98 = vmatpush2.msra.mxu0 0.0
    %99 = vmatprep.subr.mxu0 0.0
    %100 = vmatpush2.msra.mxu0 0.0
    %101 = vmatprep.subr.mxu0 0.0
    %102 = vmatpush2.msra.mxu0 0.0
    %103 = vmatprep.subr.mxu0 0.0
    %104 = vmatpush2.msra.mxu0 0.0
    %105 = vmatprep.subr.mxu0 0.0
    %106 = vmatpush2.msra.mxu0 0.0
    %107 = vmatprep.subr.mxu0 0.0
    %108 = vmatpush2.msra.mxu0 0.0
    %109 = vmatprep.subr.mxu0 0.0
    %110 = vmatpush2.msra.mxu0 0.0
    %111 = vmatprep.subr.mxu0 0.0
    %112 = vmatpush2.msra.mxu0 0.0
    %113 = vmatprep.subr.mxu0 0.0
    %114 = vmatpush2.msra.mxu0 0.0
    %115 = vmatprep.subr.mxu0 0.0
    %116 = vmatpush2.msra.mxu0 0.0
    %117 = vmatprep.mubr.f32.mxu0 0.0
    %118 = vmatmul.mubr.f32.gmra.mxu0 %v48
    %v119 = vpop.f32.mrf.mxu0
    %v120 = vadd.f32 0.0, %v119
    %v121 = vpop.f32.mrf.mxu0
    %122 = vmatprep.mubr.f32.mxu0 0.0
    %123 = vmatmul.mubr.f32.gmra.mxu0 %v51
    %v124 = vpop.f32.mrf.mxu0
    %v125 = vadd.f32 0.0, %v124
    %v126 = vpop.f32.mrf.mxu0
    %127 = vdwg.mxu0
    %v128 = vld [vmem:[%s5] sm:$0x1]
    %v129 = vld [vmem:[%s5 + $0x1] sm:$0x1]
    %v130 = vsel %vm46, %v120, 0.0
    %131 = vadd.xlane.f32.xlu0 %v130
    %v132 = vpop.xlane.xlu0 %131
    %v133 = vsel %vm46, %v125, 0.0
    %134 = vadd.xlane.f32.xlu0 %v133
    %v135 = vpop.xlane.xlu0 %134
    %v136 = vrcp.pop 32.0
    %v137 = vmul.f32 %v132, %v136
    %v138 = vmul.f32 %v135, %v136
    %v139 = vsub.f32 %v120, %v137
    %v140 = vsub.f32 %v125, %v138
    %v141 = vmul.f32 %v139, %v139
    %v142 = vmul.f32 %v140, %v140
    %v143 = vsel %vm46, %v141, 0.0
    %144 = vadd.xlane.f32.xlu0 %v143
    %v145 = vpop.xlane.xlu0 %144
    %v146 = vsel %vm46, %v142, 0.0
    %147 = vadd.xlane.f32.xlu0 %v146
    %v148 = vpop.xlane.xlu0 %147
    %v149 = vmul.f32 %v145, %v136
    %v150 = vmul.f32 %v148, %v136
    %v151 = vadd.f32 %v149, 1e-05
    %v152 = vadd.f32 %v150, 1e-05
    %v153 = vrsqrt.pop %v151
    %v154 = vrsqrt.pop %v152
    %v155 = vmul.f32 %v139, %v153
    %v156 = vmul.f32 %v140, %v154
    %v157 = vlaneseq
    %v158 = vshrl.u32 %v157, 7
    %v159 = vsub.s32 0, %v158
    %v160 = vrot.slane %v128, %v159
    %v161 = vmul.f32 %v155, %v160
    %v162 = vmul.f32 %v156, %v160
    %v163 = vlaneseq
    %v164 = vshrl.u32 %v163, 7
    %v165 = vsub.s32 0, %v164
    %v166 = vrot.slane %v129, %v165
    %v167 = vadd.f32 %v161, %v166
    %v168 = vadd.f32 %v162, %v166
    %v169 = vlaneseq
    %v170 = vshrl.u32 %v169, 7
    %v171 = vadd.s32 %v170, 8
    %v172 = vcvt.s32.f32 %v170
    %v173 = vcvt.s32.f32 %v171
    %v174 = vmul.f32 %v172, 0.125
    %v175 = vmul.f32 %v173, 0.125
    %v176 = vfloor.f32 %v174
    %v177 = vfloor.f32 %v175
    %v178 = vmul.f32 %v176, 8.0
    %v179 = vmul.f32 %v177, 8.0
    %v180 = vsub.f32 %v172, %v178
    %v181 = vsub.f32 %v173, %v179
    %vm182 = vcmp.gt.f32.partialorder %v180, 0.5
    %vm183 = vcmp.gt.f32.partialorder %v181, 0.5
    %v184 = vsel %vm182, 1, 0
    %v185 = vsel %vm183, 1, 0
    %v186 = vcvt.s32.f32 %v184
    %v187 = vcvt.s32.f32 %v185
    %vm188 = vcmp.lt.f32.partialorder %v180, 6.5
    %vm189 = vcmp.lt.f32.partialorder %v181, 6.5
    %v190 = vsel %vm188, 1, 0
    %v191 = vsel %vm189, 1, 0
    %v192 = vcvt.s32.f32 %v190
    %v193 = vcvt.s32.f32 %v191
    %v194 = vld [vmem:[%s2] sm:$0xff]
    %v195 = vld [vmem:[%s2 + $0x8] sm:$0xff]
    %v196 = vld [vmem:[%s2 + $0x10] sm:$0xff]
    %v197 = vld [vmem:[%s2 + $0x18] sm:$0xff]
    %v198 = vld [vmem:[%s2 + $0x20] sm:$0xff]
    %v199 = vld [vmem:[%s2 + $0x28] sm:$0xff]
    %v200 = vld [vmem:[%s2 + $0x30] sm:$0xff]
    %v201 = vld [vmem:[%s2 + $0x38] sm:$0xff]
    %v202 = vld [vmem:[%s2 + $0x40] sm:$0xff]
    %v203 = vld [vmem:[%s2 + $0x48] sm:$0xff]
    %v204 = vld [vmem:[%s2 + $0x50] sm:$0xff]
    %v205 = vld [vmem:[%s2 + $0x58] sm:$0xff]
    %v206 = vld [vmem:[%s5 + $0x2] sm:$0x1]
    %v207 = vrot.slane %v167, 7
    %v208 = vrot.slane %v168, 7
    %vm209 = vcmp.lt.s32.totalorder %v170, 1
    %v210 = vsel %vm209, %v207, %v208
    %v211 = vsel %vm209, %v208, %v207
    %v212 = vmul.f32 %v211, %v186
    %v213 = vmul.f32 %v210, %v187
    %v214 = vrot.slane %v167, 1
    %v215 = vrot.slane %v168, 1
    %vm216 = vcmp.lt.s32.totalorder %v170, 7
    %v217 = vsel %vm216, %v214, %v215
    %v218 = vsel %vm216, %v215, %v214
    %v219 = vmul.f32 %v217, %v192
    %v220 = vmul.f32 %v218, %v193
    %v222 = vsel %vm46, %v167, 0
    %v225 = vsel %vm46, %v168, 0
    %227 = vmatprep.subr.mxu0 0.0
    %228 = vmatpush1.msra.mxu0 0.0
    %229 = vmatprep.subr.mxu0 0.0
    %230 = vmatpush1.msra.mxu0 0.0
    %231 = vmatprep.subr.mxu0 0.0
    %232 = vmatpush1.msra.mxu0 0.0
    %233 = vmatprep.subr.mxu0 0.0
    %234 = vmatpush1.msra.mxu0 0.0
    %235 = vmatprep.subr.mxu0 0.0
    %236 = vmatpush1.msra.mxu0 0.0
    %237 = vmatprep.subr.mxu0 0.0
    %238 = vmatpush1.msra.mxu0 0.0
    %239 = vmatprep.subr.mxu0 0.0
    %240 = vmatpush1.msra.mxu0 0.0
    %241 = vmatprep.subr.mxu0 0.0
    %242 = vmatpush1.msra.mxu0 0.0
    %243 = vmatprep.subr.mxu0 0.0
    %244 = vmatpush1.msra.mxu0 0.0
    %245 = vmatprep.subr.mxu0 0.0
    %246 = vmatpush1.msra.mxu0 0.0
    %247 = vmatprep.subr.mxu0 0.0
    %248 = vmatpush1.msra.mxu0 0.0
    %249 = vmatprep.subr.mxu0 0.0
    %250 = vmatpush1.msra.mxu0 0.0
    %251 = vmatprep.subr.mxu0 0.0
    %252 = vmatpush1.msra.mxu0 %v201
    %253 = vmatprep.subr.mxu0 0.0
    %254 = vmatpush1.msra.mxu0 %v200
    %255 = vmatprep.subr.mxu0 0.0
    %256 = vmatpush1.msra.mxu0 %v199
    %257 = vmatprep.subr.mxu0 0.0
    %258 = vmatpush1.msra.mxu0 %v198
    %259 = vmatprep.subr.mxu0 0.0
    %260 = vmatpush2.msra.mxu0 0.0
    %261 = vmatprep.subr.mxu0 0.0
    %262 = vmatpush2.msra.mxu0 0.0
    %263 = vmatprep.subr.mxu0 0.0
    %264 = vmatpush2.msra.mxu0 0.0
    %265 = vmatprep.subr.mxu0 0.0
    %266 = vmatpush2.msra.mxu0 0.0
    %267 = vmatprep.subr.mxu0 0.0
    %268 = vmatpush2.msra.mxu0 0.0
    %269 = vmatprep.subr.mxu0 0.0
    %270 = vmatpush2.msra.mxu0 0.0
    %271 = vmatprep.subr.mxu0 0.0
    %272 = vmatpush2.msra.mxu0 0.0
    %273 = vmatprep.subr.mxu0 0.0
    %274 = vmatpush2.msra.mxu0 0.0
    %275 = vmatprep.subr.mxu0 0.0
    %276 = vmatpush2.msra.mxu0 0.0
    %277 = vmatprep.subr.mxu0 0.0
    %278 = vmatpush2.msra.mxu0 0.0
    %279 = vmatprep.subr.mxu0 0.0
    %280 = vmatpush2.msra.mxu0 0.0
    %281 = vmatprep.subr.mxu0 0.0
    %282 = vmatpush2.msra.mxu0 0.0
    %283 = vmatprep.subr.mxu0 0.0
    %284 = vmatpush2.msra.mxu0 0.0
    %285 = vmatprep.subr.mxu0 0.0
    %286 = vmatpush2.msra.mxu0 0.0
    %287 = vmatprep.subr.mxu0 0.0
    %288 = vmatpush2.msra.mxu0 0.0
    %289 = vmatprep.subr.mxu0 0.0
    %290 = vmatpush2.msra.mxu0 0.0
    %291 = vmatprep.mubr.f32.mxu0 0.0
    %292 = vmatmul.mubr.f32.gmra.mxu0 %v222
    %v293 = vpop.f32.mrf.mxu0
    %v294 = vadd.f32 0.0, %v293
    %v295 = vpop.f32.mrf.mxu0
    %296 = vmatprep.mubr.f32.mxu0 0.0
    %297 = vmatmul.mubr.f32.gmra.mxu0 %v225
    %v298 = vpop.f32.mrf.mxu0
    %v299 = vadd.f32 0.0, %v298
    %v300 = vpop.f32.mrf.mxu0
    %301 = vdwg.mxu0
    %v303 = vsel %vm46, %v212, 0
    %v306 = vsel %vm46, %v213, 0
    %308 = vmatprep.subr.mxu0 0.0
    %309 = vmatpush1.msra.mxu0 0.0
    %310 = vmatprep.subr.mxu0 0.0
    %311 = vmatpush1.msra.mxu0 0.0
    %312 = vmatprep.subr.mxu0 0.0
    %313 = vmatpush1.msra.mxu0 0.0
    %314 = vmatprep.subr.mxu0 0.0
    %315 = vmatpush1.msra.mxu0 0.0
    %316 = vmatprep.subr.mxu0 0.0
    %317 = vmatpush1.msra.mxu0 0.0
    %318 = vmatprep.subr.mxu0 0.0
    %319 = vmatpush1.msra.mxu0 0.0
    %320 = vmatprep.subr.mxu0 0.0
    %321 = vmatpush1.msra.mxu0 0.0
    %322 = vmatprep.subr.mxu0 0.0
    %323 = vmatpush1.msra.mxu0 0.0
    %324 = vmatprep.subr.mxu0 0.0
    %325 = vmatpush1.msra.mxu0 0.0
    %326 = vmatprep.subr.mxu0 0.0
    %327 = vmatpush1.msra.mxu0 0.0
    %328 = vmatprep.subr.mxu0 0.0
    %329 = vmatpush1.msra.mxu0 0.0
    %330 = vmatprep.subr.mxu0 0.0
    %331 = vmatpush1.msra.mxu0 0.0
    %332 = vmatprep.subr.mxu0 0.0
    %333 = vmatpush1.msra.mxu0 %v197
    %334 = vmatprep.subr.mxu0 0.0
    %335 = vmatpush1.msra.mxu0 %v196
    %336 = vmatprep.subr.mxu0 0.0
    %337 = vmatpush1.msra.mxu0 %v195
    %338 = vmatprep.subr.mxu0 0.0
    %339 = vmatpush1.msra.mxu0 %v194
    %340 = vmatprep.subr.mxu0 0.0
    %341 = vmatpush2.msra.mxu0 0.0
    %342 = vmatprep.subr.mxu0 0.0
    %343 = vmatpush2.msra.mxu0 0.0
    %344 = vmatprep.subr.mxu0 0.0
    %345 = vmatpush2.msra.mxu0 0.0
    %346 = vmatprep.subr.mxu0 0.0
    %347 = vmatpush2.msra.mxu0 0.0
    %348 = vmatprep.subr.mxu0 0.0
    %349 = vmatpush2.msra.mxu0 0.0
    %350 = vmatprep.subr.mxu0 0.0
    %351 = vmatpush2.msra.mxu0 0.0
    %352 = vmatprep.subr.mxu0 0.0
    %353 = vmatpush2.msra.mxu0 0.0
    %354 = vmatprep.subr.mxu0 0.0
    %355 = vmatpush2.msra.mxu0 0.0
    %356 = vmatprep.subr.mxu0 0.0
    %357 = vmatpush2.msra.mxu0 0.0
    %358 = vmatprep.subr.mxu0 0.0
    %359 = vmatpush2.msra.mxu0 0.0
    %360 = vmatprep.subr.mxu0 0.0
    %361 = vmatpush2.msra.mxu0 0.0
    %362 = vmatprep.subr.mxu0 0.0
    %363 = vmatpush2.msra.mxu0 0.0
    %364 = vmatprep.subr.mxu0 0.0
    %365 = vmatpush2.msra.mxu0 0.0
    %366 = vmatprep.subr.mxu0 0.0
    %367 = vmatpush2.msra.mxu0 0.0
    %368 = vmatprep.subr.mxu0 0.0
    %369 = vmatpush2.msra.mxu0 0.0
    %370 = vmatprep.subr.mxu0 0.0
    %371 = vmatpush2.msra.mxu0 0.0
    %372 = vmatprep.mubr.f32.mxu0 0.0
    %373 = vmatmul.mubr.f32.gmra.mxu0 %v303
    %v374 = vpop.f32.mrf.mxu0
    %v375 = vadd.f32 %v294, %v374
    %v376 = vpop.f32.mrf.mxu0
    %377 = vmatprep.mubr.f32.mxu0 0.0
    %378 = vmatmul.mubr.f32.gmra.mxu0 %v306
    %v379 = vpop.f32.mrf.mxu0
    %v380 = vadd.f32 %v299, %v379
    %v381 = vpop.f32.mrf.mxu0
    %382 = vdwg.mxu0
    %v384 = vsel %vm46, %v219, 0
    %v387 = vsel %vm46, %v220, 0
    %389 = vmatprep.subr.mxu0 0.0
    %390 = vmatpush1.msra.mxu0 0.0
    %391 = vmatprep.subr.mxu0 0.0
    %392 = vmatpush1.msra.mxu0 0.0
    %393 = vmatprep.subr.mxu0 0.0
    %394 = vmatpush1.msra.mxu0 0.0
    %395 = vmatprep.subr.mxu0 0.0
    %396 = vmatpush1.msra.mxu0 0.0
    %397 = vmatprep.subr.mxu0 0.0
    %398 = vmatpush1.msra.mxu0 0.0
    %399 = vmatprep.subr.mxu0 0.0
    %400 = vmatpush1.msra.mxu0 0.0
    %401 = vmatprep.subr.mxu0 0.0
    %402 = vmatpush1.msra.mxu0 0.0
    %403 = vmatprep.subr.mxu0 0.0
    %404 = vmatpush1.msra.mxu0 0.0
    %405 = vmatprep.subr.mxu0 0.0
    %406 = vmatpush1.msra.mxu0 0.0
    %407 = vmatprep.subr.mxu0 0.0
    %408 = vmatpush1.msra.mxu0 0.0
    %409 = vmatprep.subr.mxu0 0.0
    %410 = vmatpush1.msra.mxu0 0.0
    %411 = vmatprep.subr.mxu0 0.0
    %412 = vmatpush1.msra.mxu0 0.0
    %413 = vmatprep.subr.mxu0 0.0
    %414 = vmatpush1.msra.mxu0 %v205
    %415 = vmatprep.subr.mxu0 0.0
    %416 = vmatpush1.msra.mxu0 %v204
    %417 = vmatprep.subr.mxu0 0.0
    %418 = vmatpush1.msra.mxu0 %v203
    %419 = vmatprep.subr.mxu0 0.0
    %420 = vmatpush1.msra.mxu0 %v202
    %421 = vmatprep.subr.mxu0 0.0
    %422 = vmatpush2.msra.mxu0 0.0
    %423 = vmatprep.subr.mxu0 0.0
    %424 = vmatpush2.msra.mxu0 0.0
    %425 = vmatprep.subr.mxu0 0.0
    %426 = vmatpush2.msra.mxu0 0.0
    %427 = vmatprep.subr.mxu0 0.0
    %428 = vmatpush2.msra.mxu0 0.0
    %429 = vmatprep.subr.mxu0 0.0
    %430 = vmatpush2.msra.mxu0 0.0
    %431 = vmatprep.subr.mxu0 0.0
    %432 = vmatpush2.msra.mxu0 0.0
    %433 = vmatprep.subr.mxu0 0.0
    %434 = vmatpush2.msra.mxu0 0.0
    %435 = vmatprep.subr.mxu0 0.0
    %436 = vmatpush2.msra.mxu0 0.0
    %437 = vmatprep.subr.mxu0 0.0
    %438 = vmatpush2.msra.mxu0 0.0
    %439 = vmatprep.subr.mxu0 0.0
    %440 = vmatpush2.msra.mxu0 0.0
    %441 = vmatprep.subr.mxu0 0.0
    %442 = vmatpush2.msra.mxu0 0.0
    %443 = vmatprep.subr.mxu0 0.0
    %444 = vmatpush2.msra.mxu0 0.0
    %445 = vmatprep.subr.mxu0 0.0
    %446 = vmatpush2.msra.mxu0 0.0
    %447 = vmatprep.subr.mxu0 0.0
    %448 = vmatpush2.msra.mxu0 0.0
    %449 = vmatprep.subr.mxu0 0.0
    %450 = vmatpush2.msra.mxu0 0.0
    %451 = vmatprep.subr.mxu0 0.0
    %452 = vmatpush2.msra.mxu0 0.0
    %453 = vmatprep.mubr.f32.mxu0 0.0
    %454 = vmatmul.mubr.f32.gmra.mxu0 %v384
    %v455 = vpop.f32.mrf.mxu0
    %v456 = vadd.f32 0.0, %v455
    %v457 = vpop.f32.mrf.mxu0
    %458 = vmatprep.mubr.f32.mxu0 0.0
    %459 = vmatmul.mubr.f32.gmra.mxu0 %v387
    %v460 = vpop.f32.mrf.mxu0
    %v461 = vadd.f32 0.0, %v460
    %v462 = vpop.f32.mrf.mxu0
    %463 = vdwg.mxu0
    %v464 = vadd.f32 %v375, %v456
    %v465 = vadd.f32 %v380, %v461
    %v466 = vlaneseq
    %v467 = vshrl.u32 %v466, 7
    %v468 = vsub.s32 0, %v467
    %v469 = vrot.slane %v206, %v468
    %v470 = vadd.f32 %v464, %v469
    %v471 = vadd.f32 %v465, %v469
    %v472 = vxor.u32 %v470, 2147483648
    %v473 = vxor.u32 %v471, 2147483648
    %v474 = vmul.f32 %v472, 1.442695
    %v475 = vpow.pop %v474
    %v476 = vmul.f32 %v473, 1.442695
    %v477 = vpow.pop %v476
    %v478 = vadd.f32 %v475, 1.0
    %v479 = vadd.f32 %v477, 1.0
    %v480 = vrcp.pop %v478
    %v481 = vmul.f32 1.0, %v480
    %v482 = vrcp.pop %v479
    %v483 = vmul.f32 1.0, %v482
    %v484 = vsub.f32 %v470, %v167
    %v485 = vsub.f32 %v471, %v168
    %488 = vrot.lane.b32.xlu0 %v484, 32
    %v489 = vpop.permute.xlu0 %488
    %490 = vrot.lane.b32.xlu0 %v485, 32
    %v491 = vpop.permute.xlu0 %490
    %v494 = vmul.f32 %v481, %v489
    %v495 = vmul.f32 %v483, %v491
    %498 = vrot.lane.b32.xlu0 %v494, 96
    %v499 = vpop.permute.xlu0 %498
    %500 = vrot.lane.b32.xlu0 %v495, 96
    %v501 = vpop.permute.xlu0 %500
    %v504 = vadd.f32 %v167, %v499
    %v505 = vadd.f32 %v168, %v501
    %507 = vset.pattern.permute.xlu0 1
    %508 = vperm.xlu0 %507, %v24
    %v509 = vpop.permute.xlu0 %508
    %512 = vset.pattern.permute.xlu0 1
    %513 = vperm.xlu0 %512, %v25
    %v514 = vpop.permute.xlu0 %513
    %v516 = vmul.f32 %v504, %v509
    %v517 = vmul.f32 %v505, %v514
    %v518 = vld [vmem:[%s3] sm:$0xff]
    %v519 = vld [vmem:[%s3 + $0x8] sm:$0xff]
    %v520 = vld [vmem:[%s3 + $0x10] sm:$0xff]
    %v521 = vld [vmem:[%s3 + $0x18] sm:$0xff]
    %v523 = vsel %vm46, %v516, 0
    %v526 = vsel %vm46, %v517, 0
    %528 = vmatprep.subr.mxu0 0.0
    %529 = vmatpush1.msra.mxu0 0.0
    %530 = vmatprep.subr.mxu0 0.0
    %531 = vmatpush1.msra.mxu0 0.0
    %532 = vmatprep.subr.mxu0 0.0
    %533 = vmatpush1.msra.mxu0 0.0
    %534 = vmatprep.subr.mxu0 0.0
    %535 = vmatpush1.msra.mxu0 0.0
    %536 = vmatprep.subr.mxu0 0.0
    %537 = vmatpush1.msra.mxu0 0.0
    %538 = vmatprep.subr.mxu0 0.0
    %539 = vmatpush1.msra.mxu0 0.0
    %540 = vmatprep.subr.mxu0 0.0
    %541 = vmatpush1.msra.mxu0 0.0
    %542 = vmatprep.subr.mxu0 0.0
    %543 = vmatpush1.msra.mxu0 0.0
    %544 = vmatprep.subr.mxu0 0.0
    %545 = vmatpush1.msra.mxu0 0.0
    %546 = vmatprep.subr.mxu0 0.0
    %547 = vmatpush1.msra.mxu0 0.0
    %548 = vmatprep.subr.mxu0 0.0
    %549 = vmatpush1.msra.mxu0 0.0
    %550 = vmatprep.subr.mxu0 0.0
    %551 = vmatpush1.msra.mxu0 0.0
    %552 = vmatprep.subr.mxu0 0.0
    %553 = vmatpush1.msra.mxu0 %v521
    %554 = vmatprep.subr.mxu0 0.0
    %555 = vmatpush1.msra.mxu0 %v520
    %556 = vmatprep.subr.mxu0 0.0
    %557 = vmatpush1.msra.mxu0 %v519
    %558 = vmatprep.subr.mxu0 0.0
    %559 = vmatpush1.msra.mxu0 %v518
    %560 = vmatprep.subr.mxu0 0.0
    %561 = vmatpush2.msra.mxu0 0.0
    %562 = vmatprep.subr.mxu0 0.0
    %563 = vmatpush2.msra.mxu0 0.0
    %564 = vmatprep.subr.mxu0 0.0
    %565 = vmatpush2.msra.mxu0 0.0
    %566 = vmatprep.subr.mxu0 0.0
    %567 = vmatpush2.msra.mxu0 0.0
    %568 = vmatprep.subr.mxu0 0.0
    %569 = vmatpush2.msra.mxu0 0.0
    %570 = vmatprep.subr.mxu0 0.0
    %571 = vmatpush2.msra.mxu0 0.0
    %572 = vmatprep.subr.mxu0 0.0
    %573 = vmatpush2.msra.mxu0 0.0
    %574 = vmatprep.subr.mxu0 0.0
    %575 = vmatpush2.msra.mxu0 0.0
    %576 = vmatprep.subr.mxu0 0.0
    %577 = vmatpush2.msra.mxu0 0.0
    %578 = vmatprep.subr.mxu0 0.0
    %579 = vmatpush2.msra.mxu0 0.0
    %580 = vmatprep.subr.mxu0 0.0
    %581 = vmatpush2.msra.mxu0 0.0
    %582 = vmatprep.subr.mxu0 0.0
    %583 = vmatpush2.msra.mxu0 0.0
    %584 = vmatprep.subr.mxu0 0.0
    %585 = vmatpush2.msra.mxu0 0.0
    %586 = vmatprep.subr.mxu0 0.0
    %587 = vmatpush2.msra.mxu0 0.0
    %588 = vmatprep.subr.mxu0 0.0
    %589 = vmatpush2.msra.mxu0 0.0
    %590 = vmatprep.subr.mxu0 0.0
    %591 = vmatpush2.msra.mxu0 0.0
    %592 = vmatprep.mubr.f32.mxu0 0.0
    %593 = vmatmul.mubr.f32.gmra.mxu0 %v523
    %v594 = vpop.f32.mrf.mxu0
    %v595 = vadd.f32 0.0, %v594
    %v596 = vpop.f32.mrf.mxu0
    %597 = vmatprep.mubr.f32.mxu0 0.0
    %598 = vmatmul.mubr.f32.gmra.mxu0 %v526
    %v599 = vpop.f32.mrf.mxu0
    %v600 = vadd.f32 0.0, %v599
    %v601 = vpop.f32.mrf.mxu0
    %602 = vdwg.mxu0
    %v603 = vmax.f32 %v595, 0.0
    %v604 = vmax.f32 %v600, 0.0
    %v605 = vld [vmem:[%s4] sm:$0xff]
    %v606 = vld [vmem:[%s4 + $0x8] sm:$0xff]
    %v607 = vld [vmem:[%s4 + $0x10] sm:$0xff]
    %v608 = vld [vmem:[%s4 + $0x18] sm:$0xff]
    %v609 = vld [vmem:[%s4 + $0x20] sm:$0xff]
    %v610 = vld [vmem:[%s4 + $0x28] sm:$0xff]
    %v611 = vld [vmem:[%s4 + $0x30] sm:$0xff]
    %v612 = vld [vmem:[%s4 + $0x38] sm:$0xff]
    %v613 = vld [vmem:[%s4 + $0x40] sm:$0xff]
    %v614 = vld [vmem:[%s4 + $0x48] sm:$0xff]
    %v615 = vld [vmem:[%s4 + $0x50] sm:$0xff]
    %v616 = vld [vmem:[%s4 + $0x58] sm:$0xff]
    %v617 = vld [vmem:[%s4 + $0x60] sm:$0xff]
    %v618 = vld [vmem:[%s4 + $0x68] sm:$0xff]
    %v619 = vld [vmem:[%s4 + $0x70] sm:$0xff]
    %v620 = vld [vmem:[%s4 + $0x78] sm:$0xff]
    %621 = vmatprep.subr.mxu0 0.0
    %622 = vmatpush1.msra.mxu0 %v620
    %623 = vmatprep.subr.mxu0 0.0
    %624 = vmatpush1.msra.mxu0 %v619
    %625 = vmatprep.subr.mxu0 0.0
    %626 = vmatpush1.msra.mxu0 %v618
    %627 = vmatprep.subr.mxu0 0.0
    %628 = vmatpush1.msra.mxu0 %v617
    %629 = vmatprep.subr.mxu0 0.0
    %630 = vmatpush1.msra.mxu0 %v616
    %631 = vmatprep.subr.mxu0 0.0
    %632 = vmatpush1.msra.mxu0 %v615
    %633 = vmatprep.subr.mxu0 0.0
    %634 = vmatpush1.msra.mxu0 %v614
    %635 = vmatprep.subr.mxu0 0.0
    %636 = vmatpush1.msra.mxu0 %v613
    %637 = vmatprep.subr.mxu0 0.0
    %638 = vmatpush1.msra.mxu0 %v612
    %639 = vmatprep.subr.mxu0 0.0
    %640 = vmatpush1.msra.mxu0 %v611
    %641 = vmatprep.subr.mxu0 0.0
    %642 = vmatpush1.msra.mxu0 %v610
    %643 = vmatprep.subr.mxu0 0.0
    %644 = vmatpush1.msra.mxu0 %v609
    %645 = vmatprep.subr.mxu0 0.0
    %646 = vmatpush1.msra.mxu0 %v608
    %647 = vmatprep.subr.mxu0 0.0
    %648 = vmatpush1.msra.mxu0 %v607
    %649 = vmatprep.subr.mxu0 0.0
    %650 = vmatpush1.msra.mxu0 %v606
    %651 = vmatprep.subr.mxu0 0.0
    %652 = vmatpush1.msra.mxu0 %v605
    %653 = vmatprep.subr.mxu0 0.0
    %654 = vmatpush2.msra.mxu0 0.0
    %655 = vmatprep.subr.mxu0 0.0
    %656 = vmatpush2.msra.mxu0 0.0
    %657 = vmatprep.subr.mxu0 0.0
    %658 = vmatpush2.msra.mxu0 0.0
    %659 = vmatprep.subr.mxu0 0.0
    %660 = vmatpush2.msra.mxu0 0.0
    %661 = vmatprep.subr.mxu0 0.0
    %662 = vmatpush2.msra.mxu0 0.0
    %663 = vmatprep.subr.mxu0 0.0
    %664 = vmatpush2.msra.mxu0 0.0
    %665 = vmatprep.subr.mxu0 0.0
    %666 = vmatpush2.msra.mxu0 0.0
    %667 = vmatprep.subr.mxu0 0.0
    %668 = vmatpush2.msra.mxu0 0.0
    %669 = vmatprep.subr.mxu0 0.0
    %670 = vmatpush2.msra.mxu0 0.0
    %671 = vmatprep.subr.mxu0 0.0
    %672 = vmatpush2.msra.mxu0 0.0
    %673 = vmatprep.subr.mxu0 0.0
    %674 = vmatpush2.msra.mxu0 0.0
    %675 = vmatprep.subr.mxu0 0.0
    %676 = vmatpush2.msra.mxu0 0.0
    %677 = vmatprep.subr.mxu0 0.0
    %678 = vmatpush2.msra.mxu0 0.0
    %679 = vmatprep.subr.mxu0 0.0
    %680 = vmatpush2.msra.mxu0 0.0
    %681 = vmatprep.subr.mxu0 0.0
    %682 = vmatpush2.msra.mxu0 0.0
    %683 = vmatprep.subr.mxu0 0.0
    %684 = vmatpush2.msra.mxu0 0.0
    %685 = vmatprep.mubr.f32.mxu0 0.0
    %686 = vmatmul.mubr.f32.gmra.mxu0 %v603
    %v687 = vpop.f32.mrf.mxu0
    %v688 = vadd.f32 0.0, %v687
    %v689 = vpop.f32.mrf.mxu0
    %690 = vmatprep.mubr.f32.mxu0 0.0
    %691 = vmatmul.mubr.f32.gmra.mxu0 %v604
    %v692 = vpop.f32.mrf.mxu0
    %v693 = vadd.f32 0.0, %v692
    %v694 = vpop.f32.mrf.mxu0
    %695 = vdwg.mxu0
    %s696 = scalar_lea.vmem %s2, 96
    %v697 = vld [vmem:[%s696] sm:$0xff]
    %v698 = vld [vmem:[%s696 + $0x8] sm:$0xff]
    %v699 = vld [vmem:[%s696 + $0x10] sm:$0xff]
    %v700 = vld [vmem:[%s696 + $0x18] sm:$0xff]
    %v701 = vld [vmem:[%s696 + $0x20] sm:$0xff]
    %v702 = vld [vmem:[%s696 + $0x28] sm:$0xff]
    %v703 = vld [vmem:[%s696 + $0x30] sm:$0xff]
    %v704 = vld [vmem:[%s696 + $0x38] sm:$0xff]
    %v705 = vld [vmem:[%s696 + $0x40] sm:$0xff]
    %v706 = vld [vmem:[%s696 + $0x48] sm:$0xff]
    %v707 = vld [vmem:[%s696 + $0x50] sm:$0xff]
    %v708 = vld [vmem:[%s696 + $0x58] sm:$0xff]
    %v709 = vld [vmem:[%s5 + $0x3] sm:$0x1]
    %v710 = vrot.slane %v688, 7
    %v711 = vrot.slane %v693, 7
    %v712 = vsel %vm209, %v710, %v711
    %v713 = vsel %vm209, %v711, %v710
    %v714 = vmul.f32 %v713, %v186
    %v715 = vmul.f32 %v712, %v187
    %v716 = vrot.slane %v688, 1
    %v717 = vrot.slane %v693, 1
    %v718 = vsel %vm216, %v716, %v717
    %v719 = vsel %vm216, %v717, %v716
    %v720 = vmul.f32 %v718, %v192
    %v721 = vmul.f32 %v719, %v193
    %v723 = vsel %vm46, %v688, 0
    %v726 = vsel %vm46, %v693, 0
    %728 = vmatprep.subr.mxu0 0.0
    %729 = vmatpush1.msra.mxu0 0.0
    %730 = vmatprep.subr.mxu0 0.0
    %731 = vmatpush1.msra.mxu0 0.0
    %732 = vmatprep.subr.mxu0 0.0
    %733 = vmatpush1.msra.mxu0 0.0
    %734 = vmatprep.subr.mxu0 0.0
    %735 = vmatpush1.msra.mxu0 0.0
    %736 = vmatprep.subr.mxu0 0.0
    %737 = vmatpush1.msra.mxu0 0.0
    %738 = vmatprep.subr.mxu0 0.0
    %739 = vmatpush1.msra.mxu0 0.0
    %740 = vmatprep.subr.mxu0 0.0
    %741 = vmatpush1.msra.mxu0 0.0
    %742 = vmatprep.subr.mxu0 0.0
    %743 = vmatpush1.msra.mxu0 0.0
    %744 = vmatprep.subr.mxu0 0.0
    %745 = vmatpush1.msra.mxu0 0.0
    %746 = vmatprep.subr.mxu0 0.0
    %747 = vmatpush1.msra.mxu0 0.0
    %748 = vmatprep.subr.mxu0 0.0
    %749 = vmatpush1.msra.mxu0 0.0
    %750 = vmatprep.subr.mxu0 0.0
    %751 = vmatpush1.msra.mxu0 0.0
    %752 = vmatprep.subr.mxu0 0.0
    %753 = vmatpush1.msra.mxu0 %v704
    %754 = vmatprep.subr.mxu0 0.0
    %755 = vmatpush1.msra.mxu0 %v703
    %756 = vmatprep.subr.mxu0 0.0
    %757 = vmatpush1.msra.mxu0 %v702
    %758 = vmatprep.subr.mxu0 0.0
    %759 = vmatpush1.msra.mxu0 %v701
    %760 = vmatprep.subr.mxu0 0.0
    %761 = vmatpush2.msra.mxu0 0.0
    %762 = vmatprep.subr.mxu0 0.0
    %763 = vmatpush2.msra.mxu0 0.0
    %764 = vmatprep.subr.mxu0 0.0
    %765 = vmatpush2.msra.mxu0 0.0
    %766 = vmatprep.subr.mxu0 0.0
    %767 = vmatpush2.msra.mxu0 0.0
    %768 = vmatprep.subr.mxu0 0.0
    %769 = vmatpush2.msra.mxu0 0.0
    %770 = vmatprep.subr.mxu0 0.0
    %771 = vmatpush2.msra.mxu0 0.0
    %772 = vmatprep.subr.mxu0 0.0
    %773 = vmatpush2.msra.mxu0 0.0
    %774 = vmatprep.subr.mxu0 0.0
    %775 = vmatpush2.msra.mxu0 0.0
    %776 = vmatprep.subr.mxu0 0.0
    %777 = vmatpush2.msra.mxu0 0.0
    %778 = vmatprep.subr.mxu0 0.0
    %779 = vmatpush2.msra.mxu0 0.0
    %780 = vmatprep.subr.mxu0 0.0
    %781 = vmatpush2.msra.mxu0 0.0
    %782 = vmatprep.subr.mxu0 0.0
    %783 = vmatpush2.msra.mxu0 0.0
    %784 = vmatprep.subr.mxu0 0.0
    %785 = vmatpush2.msra.mxu0 0.0
    %786 = vmatprep.subr.mxu0 0.0
    %787 = vmatpush2.msra.mxu0 0.0
    %788 = vmatprep.subr.mxu0 0.0
    %789 = vmatpush2.msra.mxu0 0.0
    %790 = vmatprep.subr.mxu0 0.0
    %791 = vmatpush2.msra.mxu0 0.0
    %792 = vmatprep.mubr.f32.mxu0 0.0
    %793 = vmatmul.mubr.f32.gmra.mxu0 %v723
    %v794 = vpop.f32.mrf.mxu0
    %v795 = vadd.f32 0.0, %v794
    %v796 = vpop.f32.mrf.mxu0
    %797 = vmatprep.mubr.f32.mxu0 0.0
    %798 = vmatmul.mubr.f32.gmra.mxu0 %v726
    %v799 = vpop.f32.mrf.mxu0
    %v800 = vadd.f32 0.0, %v799
    %v801 = vpop.f32.mrf.mxu0
    %802 = vdwg.mxu0
    %v804 = vsel %vm46, %v714, 0
    %v807 = vsel %vm46, %v715, 0
    %809 = vmatprep.subr.mxu0 0.0
    %810 = vmatpush1.msra.mxu0 0.0
    %811 = vmatprep.subr.mxu0 0.0
    %812 = vmatpush1.msra.mxu0 0.0
    %813 = vmatprep.subr.mxu0 0.0
    %814 = vmatpush1.msra.mxu0 0.0
    %815 = vmatprep.subr.mxu0 0.0
    %816 = vmatpush1.msra.mxu0 0.0
    %817 = vmatprep.subr.mxu0 0.0
    %818 = vmatpush1.msra.mxu0 0.0
    %819 = vmatprep.subr.mxu0 0.0
    %820 = vmatpush1.msra.mxu0 0.0
    %821 = vmatprep.subr.mxu0 0.0
    %822 = vmatpush1.msra.mxu0 0.0
    %823 = vmatprep.subr.mxu0 0.0
    %824 = vmatpush1.msra.mxu0 0.0
    %825 = vmatprep.subr.mxu0 0.0
    %826 = vmatpush1.msra.mxu0 0.0
    %827 = vmatprep.subr.mxu0 0.0
    %828 = vmatpush1.msra.mxu0 0.0
    %829 = vmatprep.subr.mxu0 0.0
    %830 = vmatpush1.msra.mxu0 0.0
    %831 = vmatprep.subr.mxu0 0.0
    %832 = vmatpush1.msra.mxu0 0.0
    %833 = vmatprep.subr.mxu0 0.0
    %834 = vmatpush1.msra.mxu0 %v700
    %835 = vmatprep.subr.mxu0 0.0
    %836 = vmatpush1.msra.mxu0 %v699
    %837 = vmatprep.subr.mxu0 0.0
    %838 = vmatpush1.msra.mxu0 %v698
    %839 = vmatprep.subr.mxu0 0.0
    %840 = vmatpush1.msra.mxu0 %v697
    %841 = vmatprep.subr.mxu0 0.0
    %842 = vmatpush2.msra.mxu0 0.0
    %843 = vmatprep.subr.mxu0 0.0
    %844 = vmatpush2.msra.mxu0 0.0
    %845 = vmatprep.subr.mxu0 0.0
    %846 = vmatpush2.msra.mxu0 0.0
    %847 = vmatprep.subr.mxu0 0.0
    %848 = vmatpush2.msra.mxu0 0.0
    %849 = vmatprep.subr.mxu0 0.0
    %850 = vmatpush2.msra.mxu0 0.0
    %851 = vmatprep.subr.mxu0 0.0
    %852 = vmatpush2.msra.mxu0 0.0
    %853 = vmatprep.subr.mxu0 0.0
    %854 = vmatpush2.msra.mxu0 0.0
    %855 = vmatprep.subr.mxu0 0.0
    %856 = vmatpush2.msra.mxu0 0.0
    %857 = vmatprep.subr.mxu0 0.0
    %858 = vmatpush2.msra.mxu0 0.0
    %859 = vmatprep.subr.mxu0 0.0
    %860 = vmatpush2.msra.mxu0 0.0
    %861 = vmatprep.subr.mxu0 0.0
    %862 = vmatpush2.msra.mxu0 0.0
    %863 = vmatprep.subr.mxu0 0.0
    %864 = vmatpush2.msra.mxu0 0.0
    %865 = vmatprep.subr.mxu0 0.0
    %866 = vmatpush2.msra.mxu0 0.0
    %867 = vmatprep.subr.mxu0 0.0
    %868 = vmatpush2.msra.mxu0 0.0
    %869 = vmatprep.subr.mxu0 0.0
    %870 = vmatpush2.msra.mxu0 0.0
    %871 = vmatprep.subr.mxu0 0.0
    %872 = vmatpush2.msra.mxu0 0.0
    %873 = vmatprep.mubr.f32.mxu0 0.0
    %874 = vmatmul.mubr.f32.gmra.mxu0 %v804
    %v875 = vpop.f32.mrf.mxu0
    %v876 = vadd.f32 %v795, %v875
    %v877 = vpop.f32.mrf.mxu0
    %878 = vmatprep.mubr.f32.mxu0 0.0
    %879 = vmatmul.mubr.f32.gmra.mxu0 %v807
    %v880 = vpop.f32.mrf.mxu0
    %v881 = vadd.f32 %v800, %v880
    %v882 = vpop.f32.mrf.mxu0
    %883 = vdwg.mxu0
    %v885 = vsel %vm46, %v720, 0
    %v888 = vsel %vm46, %v721, 0
    %890 = vmatprep.subr.mxu0 0.0
    %891 = vmatpush1.msra.mxu0 0.0
    %892 = vmatprep.subr.mxu0 0.0
    %893 = vmatpush1.msra.mxu0 0.0
    %894 = vmatprep.subr.mxu0 0.0
    %895 = vmatpush1.msra.mxu0 0.0
    %896 = vmatprep.subr.mxu0 0.0
    %897 = vmatpush1.msra.mxu0 0.0
    %898 = vmatprep.subr.mxu0 0.0
    %899 = vmatpush1.msra.mxu0 0.0
    %900 = vmatprep.subr.mxu0 0.0
    %901 = vmatpush1.msra.mxu0 0.0
    %902 = vmatprep.subr.mxu0 0.0
    %903 = vmatpush1.msra.mxu0 0.0
    %904 = vmatprep.subr.mxu0 0.0
    %905 = vmatpush1.msra.mxu0 0.0
    %906 = vmatprep.subr.mxu0 0.0
    %907 = vmatpush1.msra.mxu0 0.0
    %908 = vmatprep.subr.mxu0 0.0
    %909 = vmatpush1.msra.mxu0 0.0
    %910 = vmatprep.subr.mxu0 0.0
    %911 = vmatpush1.msra.mxu0 0.0
    %912 = vmatprep.subr.mxu0 0.0
    %913 = vmatpush1.msra.mxu0 0.0
    %914 = vmatprep.subr.mxu0 0.0
    %915 = vmatpush1.msra.mxu0 %v708
    %916 = vmatprep.subr.mxu0 0.0
    %917 = vmatpush1.msra.mxu0 %v707
    %918 = vmatprep.subr.mxu0 0.0
    %919 = vmatpush1.msra.mxu0 %v706
    %920 = vmatprep.subr.mxu0 0.0
    %921 = vmatpush1.msra.mxu0 %v705
    %922 = vmatprep.subr.mxu0 0.0
    %923 = vmatpush2.msra.mxu0 0.0
    %924 = vmatprep.subr.mxu0 0.0
    %925 = vmatpush2.msra.mxu0 0.0
    %926 = vmatprep.subr.mxu0 0.0
    %927 = vmatpush2.msra.mxu0 0.0
    %928 = vmatprep.subr.mxu0 0.0
    %929 = vmatpush2.msra.mxu0 0.0
    %930 = vmatprep.subr.mxu0 0.0
    %931 = vmatpush2.msra.mxu0 0.0
    %932 = vmatprep.subr.mxu0 0.0
    %933 = vmatpush2.msra.mxu0 0.0
    %934 = vmatprep.subr.mxu0 0.0
    %935 = vmatpush2.msra.mxu0 0.0
    %936 = vmatprep.subr.mxu0 0.0
    %937 = vmatpush2.msra.mxu0 0.0
    %938 = vmatprep.subr.mxu0 0.0
    %939 = vmatpush2.msra.mxu0 0.0
    %940 = vmatprep.subr.mxu0 0.0
    %941 = vmatpush2.msra.mxu0 0.0
    %942 = vmatprep.subr.mxu0 0.0
    %943 = vmatpush2.msra.mxu0 0.0
    %944 = vmatprep.subr.mxu0 0.0
    %945 = vmatpush2.msra.mxu0 0.0
    %946 = vmatprep.subr.mxu0 0.0
    %947 = vmatpush2.msra.mxu0 0.0
    %948 = vmatprep.subr.mxu0 0.0
    %949 = vmatpush2.msra.mxu0 0.0
    %950 = vmatprep.subr.mxu0 0.0
    %951 = vmatpush2.msra.mxu0 0.0
    %952 = vmatprep.subr.mxu0 0.0
    %953 = vmatpush2.msra.mxu0 0.0
    %954 = vmatprep.mubr.f32.mxu0 0.0
    %955 = vmatmul.mubr.f32.gmra.mxu0 %v885
    %v956 = vpop.f32.mrf.mxu0
    %v957 = vadd.f32 0.0, %v956
    %v958 = vpop.f32.mrf.mxu0
    %959 = vmatprep.mubr.f32.mxu0 0.0
    %960 = vmatmul.mubr.f32.gmra.mxu0 %v888
    %v961 = vpop.f32.mrf.mxu0
    %v962 = vadd.f32 0.0, %v961
    %v963 = vpop.f32.mrf.mxu0
    %964 = vdwg.mxu0
    %v965 = vadd.f32 %v876, %v957
    %v966 = vadd.f32 %v881, %v962
    %v967 = vlaneseq
    %v968 = vshrl.u32 %v967, 7
    %v969 = vsub.s32 0, %v968
    %v970 = vrot.slane %v709, %v969
    %v971 = vadd.f32 %v965, %v970
    %v972 = vadd.f32 %v966, %v970
    %v973 = vxor.u32 %v971, 2147483648
    %v974 = vxor.u32 %v972, 2147483648
    %v975 = vmul.f32 %v973, 1.442695
    %v976 = vpow.pop %v975
    %v977 = vmul.f32 %v974, 1.442695
    %v978 = vpow.pop %v977
    %v979 = vadd.f32 %v976, 1.0
    %v980 = vadd.f32 %v978, 1.0
    %v981 = vrcp.pop %v979
    %v982 = vmul.f32 1.0, %v981
    %v983 = vrcp.pop %v980
    %v984 = vmul.f32 1.0, %v983
    %v985 = vsub.f32 %v971, %v688
    %v986 = vsub.f32 %v972, %v693
    %989 = vrot.lane.b32.xlu0 %v985, 32
    %v990 = vpop.permute.xlu0 %989
    %991 = vrot.lane.b32.xlu0 %v986, 32
    %v992 = vpop.permute.xlu0 %991
    %v995 = vmul.f32 %v982, %v990
    %v996 = vmul.f32 %v984, %v992
    %999 = vrot.lane.b32.xlu0 %v995, 96
    %v1000 = vpop.permute.xlu0 %999
    %1001 = vrot.lane.b32.xlu0 %v996, 96
    %v1002 = vpop.permute.xlu0 %1001
    %v1005 = vadd.f32 %v688, %v1000
    %v1006 = vadd.f32 %v693, %v1002
    %v1007 = vmul.f32 %v1005, %v509
    %v1008 = vmul.f32 %v1006, %v514
    %s1009 = scalar_lea.vmem %s3, 32
    %v1010 = vld [vmem:[%s1009] sm:$0xff]
    %v1011 = vld [vmem:[%s1009 + $0x8] sm:$0xff]
    %v1012 = vld [vmem:[%s1009 + $0x10] sm:$0xff]
    %v1013 = vld [vmem:[%s1009 + $0x18] sm:$0xff]
    %v1015 = vsel %vm46, %v1007, 0
    %v1018 = vsel %vm46, %v1008, 0
    %1020 = vmatprep.subr.mxu0 0.0
    %1021 = vmatpush1.msra.mxu0 0.0
    %1022 = vmatprep.subr.mxu0 0.0
    %1023 = vmatpush1.msra.mxu0 0.0
    %1024 = vmatprep.subr.mxu0 0.0
    %1025 = vmatpush1.msra.mxu0 0.0
    %1026 = vmatprep.subr.mxu0 0.0
    %1027 = vmatpush1.msra.mxu0 0.0
    %1028 = vmatprep.subr.mxu0 0.0
    %1029 = vmatpush1.msra.mxu0 0.0
    %1030 = vmatprep.subr.mxu0 0.0
    %1031 = vmatpush1.msra.mxu0 0.0
    %1032 = vmatprep.subr.mxu0 0.0
    %1033 = vmatpush1.msra.mxu0 0.0
    %1034 = vmatprep.subr.mxu0 0.0
    %1035 = vmatpush1.msra.mxu0 0.0
    %1036 = vmatprep.subr.mxu0 0.0
    %1037 = vmatpush1.msra.mxu0 0.0
    %1038 = vmatprep.subr.mxu0 0.0
    %1039 = vmatpush1.msra.mxu0 0.0
    %1040 = vmatprep.subr.mxu0 0.0
    %1041 = vmatpush1.msra.mxu0 0.0
    %1042 = vmatprep.subr.mxu0 0.0
    %1043 = vmatpush1.msra.mxu0 0.0
    %1044 = vmatprep.subr.mxu0 0.0
    %1045 = vmatpush1.msra.mxu0 %v1013
    %1046 = vmatprep.subr.mxu0 0.0
    %1047 = vmatpush1.msra.mxu0 %v1012
    %1048 = vmatprep.subr.mxu0 0.0
    %1049 = vmatpush1.msra.mxu0 %v1011
    %1050 = vmatprep.subr.mxu0 0.0
    %1051 = vmatpush1.msra.mxu0 %v1010
    %1052 = vmatprep.subr.mxu0 0.0
    %1053 = vmatpush2.msra.mxu0 0.0
    %1054 = vmatprep.subr.mxu0 0.0
    %1055 = vmatpush2.msra.mxu0 0.0
    %1056 = vmatprep.subr.mxu0 0.0
    %1057 = vmatpush2.msra.mxu0 0.0
    %1058 = vmatprep.subr.mxu0 0.0
    %1059 = vmatpush2.msra.mxu0 0.0
    %1060 = vmatprep.subr.mxu0 0.0
    %1061 = vmatpush2.msra.mxu0 0.0
    %1062 = vmatprep.subr.mxu0 0.0
    %1063 = vmatpush2.msra.mxu0 0.0
    %1064 = vmatprep.subr.mxu0 0.0
    %1065 = vmatpush2.msra.mxu0 0.0
    %1066 = vmatprep.subr.mxu0 0.0
    %1067 = vmatpush2.msra.mxu0 0.0
    %1068 = vmatprep.subr.mxu0 0.0
    %1069 = vmatpush2.msra.mxu0 0.0
    %1070 = vmatprep.subr.mxu0 0.0
    %1071 = vmatpush2.msra.mxu0 0.0
    %1072 = vmatprep.subr.mxu0 0.0
    %1073 = vmatpush2.msra.mxu0 0.0
    %1074 = vmatprep.subr.mxu0 0.0
    %1075 = vmatpush2.msra.mxu0 0.0
    %1076 = vmatprep.subr.mxu0 0.0
    %1077 = vmatpush2.msra.mxu0 0.0
    %1078 = vmatprep.subr.mxu0 0.0
    %1079 = vmatpush2.msra.mxu0 0.0
    %1080 = vmatprep.subr.mxu0 0.0
    %1081 = vmatpush2.msra.mxu0 0.0
    %1082 = vmatprep.subr.mxu0 0.0
    %1083 = vmatpush2.msra.mxu0 0.0
    %1084 = vmatprep.mubr.f32.mxu0 0.0
    %1085 = vmatmul.mubr.f32.gmra.mxu0 %v1015
    %v1086 = vpop.f32.mrf.mxu0
    %v1087 = vadd.f32 0.0, %v1086
    %v1088 = vpop.f32.mrf.mxu0
    %1089 = vmatprep.mubr.f32.mxu0 0.0
    %1090 = vmatmul.mubr.f32.gmra.mxu0 %v1018
    %v1091 = vpop.f32.mrf.mxu0
    %v1092 = vadd.f32 0.0, %v1091
    %v1093 = vpop.f32.mrf.mxu0
    %1094 = vdwg.mxu0
    %v1095 = vmax.f32 %v1087, 0.0
    %v1096 = vmax.f32 %v1092, 0.0
    %s1097 = scalar_lea.vmem %s4, 128
    %v1098 = vld [vmem:[%s1097] sm:$0xff]
    %v1099 = vld [vmem:[%s1097 + $0x8] sm:$0xff]
    %v1100 = vld [vmem:[%s1097 + $0x10] sm:$0xff]
    %v1101 = vld [vmem:[%s1097 + $0x18] sm:$0xff]
    %v1102 = vld [vmem:[%s1097 + $0x20] sm:$0xff]
    %v1103 = vld [vmem:[%s1097 + $0x28] sm:$0xff]
    %v1104 = vld [vmem:[%s1097 + $0x30] sm:$0xff]
    %v1105 = vld [vmem:[%s1097 + $0x38] sm:$0xff]
    %v1106 = vld [vmem:[%s1097 + $0x40] sm:$0xff]
    %v1107 = vld [vmem:[%s1097 + $0x48] sm:$0xff]
    %v1108 = vld [vmem:[%s1097 + $0x50] sm:$0xff]
    %v1109 = vld [vmem:[%s1097 + $0x58] sm:$0xff]
    %v1110 = vld [vmem:[%s1097 + $0x60] sm:$0xff]
    %v1111 = vld [vmem:[%s1097 + $0x68] sm:$0xff]
    %v1112 = vld [vmem:[%s1097 + $0x70] sm:$0xff]
    %v1113 = vld [vmem:[%s1097 + $0x78] sm:$0xff]
    %1114 = vmatprep.subr.mxu0 0.0
    %1115 = vmatpush1.msra.mxu0 %v1113
    %1116 = vmatprep.subr.mxu0 0.0
    %1117 = vmatpush1.msra.mxu0 %v1112
    %1118 = vmatprep.subr.mxu0 0.0
    %1119 = vmatpush1.msra.mxu0 %v1111
    %1120 = vmatprep.subr.mxu0 0.0
    %1121 = vmatpush1.msra.mxu0 %v1110
    %1122 = vmatprep.subr.mxu0 0.0
    %1123 = vmatpush1.msra.mxu0 %v1109
    %1124 = vmatprep.subr.mxu0 0.0
    %1125 = vmatpush1.msra.mxu0 %v1108
    %1126 = vmatprep.subr.mxu0 0.0
    %1127 = vmatpush1.msra.mxu0 %v1107
    %1128 = vmatprep.subr.mxu0 0.0
    %1129 = vmatpush1.msra.mxu0 %v1106
    %1130 = vmatprep.subr.mxu0 0.0
    %1131 = vmatpush1.msra.mxu0 %v1105
    %1132 = vmatprep.subr.mxu0 0.0
    %1133 = vmatpush1.msra.mxu0 %v1104
    %1134 = vmatprep.subr.mxu0 0.0
    %1135 = vmatpush1.msra.mxu0 %v1103
    %1136 = vmatprep.subr.mxu0 0.0
    %1137 = vmatpush1.msra.mxu0 %v1102
    %1138 = vmatprep.subr.mxu0 0.0
    %1139 = vmatpush1.msra.mxu0 %v1101
    %1140 = vmatprep.subr.mxu0 0.0
    %1141 = vmatpush1.msra.mxu0 %v1100
    %1142 = vmatprep.subr.mxu0 0.0
    %1143 = vmatpush1.msra.mxu0 %v1099
    %1144 = vmatprep.subr.mxu0 0.0
    %1145 = vmatpush1.msra.mxu0 %v1098
    %1146 = vmatprep.subr.mxu0 0.0
    %1147 = vmatpush2.msra.mxu0 0.0
    %1148 = vmatprep.subr.mxu0 0.0
    %1149 = vmatpush2.msra.mxu0 0.0
    %1150 = vmatprep.subr.mxu0 0.0
    %1151 = vmatpush2.msra.mxu0 0.0
    %1152 = vmatprep.subr.mxu0 0.0
    %1153 = vmatpush2.msra.mxu0 0.0
    %1154 = vmatprep.subr.mxu0 0.0
    %1155 = vmatpush2.msra.mxu0 0.0
    %1156 = vmatprep.subr.mxu0 0.0
    %1157 = vmatpush2.msra.mxu0 0.0
    %1158 = vmatprep.subr.mxu0 0.0
    %1159 = vmatpush2.msra.mxu0 0.0
    %1160 = vmatprep.subr.mxu0 0.0
    %1161 = vmatpush2.msra.mxu0 0.0
    %1162 = vmatprep.subr.mxu0 0.0
    %1163 = vmatpush2.msra.mxu0 0.0
    %1164 = vmatprep.subr.mxu0 0.0
    %1165 = vmatpush2.msra.mxu0 0.0
    %1166 = vmatprep.subr.mxu0 0.0
    %1167 = vmatpush2.msra.mxu0 0.0
    %1168 = vmatprep.subr.mxu0 0.0
    %1169 = vmatpush2.msra.mxu0 0.0
    %1170 = vmatprep.subr.mxu0 0.0
    %1171 = vmatpush2.msra.mxu0 0.0
    %1172 = vmatprep.subr.mxu0 0.0
    %1173 = vmatpush2.msra.mxu0 0.0
    %1174 = vmatprep.subr.mxu0 0.0
    %1175 = vmatpush2.msra.mxu0 0.0
    %1176 = vmatprep.subr.mxu0 0.0
    %1177 = vmatpush2.msra.mxu0 0.0
    %1178 = vmatprep.mubr.f32.mxu0 0.0
    %1179 = vmatmul.mubr.f32.gmra.mxu0 %v1095
    %v1180 = vpop.f32.mrf.mxu0
    %v1181 = vadd.f32 0.0, %v1180
    %v1182 = vpop.f32.mrf.mxu0
    %1183 = vmatprep.mubr.f32.mxu0 0.0
    %1184 = vmatmul.mubr.f32.gmra.mxu0 %v1096
    %v1185 = vpop.f32.mrf.mxu0
    %v1186 = vadd.f32 0.0, %v1185
    %v1187 = vpop.f32.mrf.mxu0
    %1188 = vdwg.mxu0
    %s1189 = scalar_lea.vmem %s2, 192
    %v1190 = vld [vmem:[%s1189] sm:$0xff]
    %v1191 = vld [vmem:[%s1189 + $0x8] sm:$0xff]
    %v1192 = vld [vmem:[%s1189 + $0x10] sm:$0xff]
    %v1193 = vld [vmem:[%s1189 + $0x18] sm:$0xff]
    %v1194 = vld [vmem:[%s1189 + $0x20] sm:$0xff]
    %v1195 = vld [vmem:[%s1189 + $0x28] sm:$0xff]
    %v1196 = vld [vmem:[%s1189 + $0x30] sm:$0xff]
    %v1197 = vld [vmem:[%s1189 + $0x38] sm:$0xff]
    %v1198 = vld [vmem:[%s1189 + $0x40] sm:$0xff]
    %v1199 = vld [vmem:[%s1189 + $0x48] sm:$0xff]
    %v1200 = vld [vmem:[%s1189 + $0x50] sm:$0xff]
    %v1201 = vld [vmem:[%s1189 + $0x58] sm:$0xff]
    %v1202 = vld [vmem:[%s5 + $0x4] sm:$0x1]
    %v1203 = vrot.slane %v1181, 7
    %v1204 = vrot.slane %v1186, 7
    %v1205 = vsel %vm209, %v1203, %v1204
    %v1206 = vsel %vm209, %v1204, %v1203
    %v1207 = vmul.f32 %v1206, %v186
    %v1208 = vmul.f32 %v1205, %v187
    %v1209 = vrot.slane %v1181, 1
    %v1210 = vrot.slane %v1186, 1
    %v1211 = vsel %vm216, %v1209, %v1210
    %v1212 = vsel %vm216, %v1210, %v1209
    %v1213 = vmul.f32 %v1211, %v192
    %v1214 = vmul.f32 %v1212, %v193
    %v1216 = vsel %vm46, %v1181, 0
    %v1219 = vsel %vm46, %v1186, 0
    %1221 = vmatprep.subr.mxu0 0.0
    %1222 = vmatpush1.msra.mxu0 0.0
    %1223 = vmatprep.subr.mxu0 0.0
    %1224 = vmatpush1.msra.mxu0 0.0
    %1225 = vmatprep.subr.mxu0 0.0
    %1226 = vmatpush1.msra.mxu0 0.0
    %1227 = vmatprep.subr.mxu0 0.0
    %1228 = vmatpush1.msra.mxu0 0.0
    %1229 = vmatprep.subr.mxu0 0.0
    %1230 = vmatpush1.msra.mxu0 0.0
    %1231 = vmatprep.subr.mxu0 0.0
    %1232 = vmatpush1.msra.mxu0 0.0
    %1233 = vmatprep.subr.mxu0 0.0
    %1234 = vmatpush1.msra.mxu0 0.0
    %1235 = vmatprep.subr.mxu0 0.0
    %1236 = vmatpush1.msra.mxu0 0.0
    %1237 = vmatprep.subr.mxu0 0.0
    %1238 = vmatpush1.msra.mxu0 0.0
    %1239 = vmatprep.subr.mxu0 0.0
    %1240 = vmatpush1.msra.mxu0 0.0
    %1241 = vmatprep.subr.mxu0 0.0
    %1242 = vmatpush1.msra.mxu0 0.0
    %1243 = vmatprep.subr.mxu0 0.0
    %1244 = vmatpush1.msra.mxu0 0.0
    %1245 = vmatprep.subr.mxu0 0.0
    %1246 = vmatpush1.msra.mxu0 %v1197
    %1247 = vmatprep.subr.mxu0 0.0
    %1248 = vmatpush1.msra.mxu0 %v1196
    %1249 = vmatprep.subr.mxu0 0.0
    %1250 = vmatpush1.msra.mxu0 %v1195
    %1251 = vmatprep.subr.mxu0 0.0
    %1252 = vmatpush1.msra.mxu0 %v1194
    %1253 = vmatprep.subr.mxu0 0.0
    %1254 = vmatpush2.msra.mxu0 0.0
    %1255 = vmatprep.subr.mxu0 0.0
    %1256 = vmatpush2.msra.mxu0 0.0
    %1257 = vmatprep.subr.mxu0 0.0
    %1258 = vmatpush2.msra.mxu0 0.0
    %1259 = vmatprep.subr.mxu0 0.0
    %1260 = vmatpush2.msra.mxu0 0.0
    %1261 = vmatprep.subr.mxu0 0.0
    %1262 = vmatpush2.msra.mxu0 0.0
    %1263 = vmatprep.subr.mxu0 0.0
    %1264 = vmatpush2.msra.mxu0 0.0
    %1265 = vmatprep.subr.mxu0 0.0
    %1266 = vmatpush2.msra.mxu0 0.0
    %1267 = vmatprep.subr.mxu0 0.0
    %1268 = vmatpush2.msra.mxu0 0.0
    %1269 = vmatprep.subr.mxu0 0.0
    %1270 = vmatpush2.msra.mxu0 0.0
    %1271 = vmatprep.subr.mxu0 0.0
    %1272 = vmatpush2.msra.mxu0 0.0
    %1273 = vmatprep.subr.mxu0 0.0
    %1274 = vmatpush2.msra.mxu0 0.0
    %1275 = vmatprep.subr.mxu0 0.0
    %1276 = vmatpush2.msra.mxu0 0.0
    %1277 = vmatprep.subr.mxu0 0.0
    %1278 = vmatpush2.msra.mxu0 0.0
    %1279 = vmatprep.subr.mxu0 0.0
    %1280 = vmatpush2.msra.mxu0 0.0
    %1281 = vmatprep.subr.mxu0 0.0
    %1282 = vmatpush2.msra.mxu0 0.0
    %1283 = vmatprep.subr.mxu0 0.0
    %1284 = vmatpush2.msra.mxu0 0.0
    %1285 = vmatprep.mubr.f32.mxu0 0.0
    %1286 = vmatmul.mubr.f32.gmra.mxu0 %v1216
    %v1287 = vpop.f32.mrf.mxu0
    %v1288 = vadd.f32 0.0, %v1287
    %v1289 = vpop.f32.mrf.mxu0
    %1290 = vmatprep.mubr.f32.mxu0 0.0
    %1291 = vmatmul.mubr.f32.gmra.mxu0 %v1219
    %v1292 = vpop.f32.mrf.mxu0
    %v1293 = vadd.f32 0.0, %v1292
    %v1294 = vpop.f32.mrf.mxu0
    %1295 = vdwg.mxu0
    %v1297 = vsel %vm46, %v1207, 0
    %v1300 = vsel %vm46, %v1208, 0
    %1302 = vmatprep.subr.mxu0 0.0
    %1303 = vmatpush1.msra.mxu0 0.0
    %1304 = vmatprep.subr.mxu0 0.0
    %1305 = vmatpush1.msra.mxu0 0.0
    %1306 = vmatprep.subr.mxu0 0.0
    %1307 = vmatpush1.msra.mxu0 0.0
    %1308 = vmatprep.subr.mxu0 0.0
    %1309 = vmatpush1.msra.mxu0 0.0
    %1310 = vmatprep.subr.mxu0 0.0
    %1311 = vmatpush1.msra.mxu0 0.0
    %1312 = vmatprep.subr.mxu0 0.0
    %1313 = vmatpush1.msra.mxu0 0.0
    %1314 = vmatprep.subr.mxu0 0.0
    %1315 = vmatpush1.msra.mxu0 0.0
    %1316 = vmatprep.subr.mxu0 0.0
    %1317 = vmatpush1.msra.mxu0 0.0
    %1318 = vmatprep.subr.mxu0 0.0
    %1319 = vmatpush1.msra.mxu0 0.0
    %1320 = vmatprep.subr.mxu0 0.0
    %1321 = vmatpush1.msra.mxu0 0.0
    %1322 = vmatprep.subr.mxu0 0.0
    %1323 = vmatpush1.msra.mxu0 0.0
    %1324 = vmatprep.subr.mxu0 0.0
    %1325 = vmatpush1.msra.mxu0 0.0
    %1326 = vmatprep.subr.mxu0 0.0
    %1327 = vmatpush1.msra.mxu0 %v1193
    %1328 = vmatprep.subr.mxu0 0.0
    %1329 = vmatpush1.msra.mxu0 %v1192
    %1330 = vmatprep.subr.mxu0 0.0
    %1331 = vmatpush1.msra.mxu0 %v1191
    %1332 = vmatprep.subr.mxu0 0.0
    %1333 = vmatpush1.msra.mxu0 %v1190
    %1334 = vmatprep.subr.mxu0 0.0
    %1335 = vmatpush2.msra.mxu0 0.0
    %1336 = vmatprep.subr.mxu0 0.0
    %1337 = vmatpush2.msra.mxu0 0.0
    %1338 = vmatprep.subr.mxu0 0.0
    %1339 = vmatpush2.msra.mxu0 0.0
    %1340 = vmatprep.subr.mxu0 0.0
    %1341 = vmatpush2.msra.mxu0 0.0
    %1342 = vmatprep.subr.mxu0 0.0
    %1343 = vmatpush2.msra.mxu0 0.0
    %1344 = vmatprep.subr.mxu0 0.0
    %1345 = vmatpush2.msra.mxu0 0.0
    %1346 = vmatprep.subr.mxu0 0.0
    %1347 = vmatpush2.msra.mxu0 0.0
    %1348 = vmatprep.subr.mxu0 0.0
    %1349 = vmatpush2.msra.mxu0 0.0
    %1350 = vmatprep.subr.mxu0 0.0
    %1351 = vmatpush2.msra.mxu0 0.0
    %1352 = vmatprep.subr.mxu0 0.0
    %1353 = vmatpush2.msra.mxu0 0.0
    %1354 = vmatprep.subr.mxu0 0.0
    %1355 = vmatpush2.msra.mxu0 0.0
    %1356 = vmatprep.subr.mxu0 0.0
    %1357 = vmatpush2.msra.mxu0 0.0
    %1358 = vmatprep.subr.mxu0 0.0
    %1359 = vmatpush2.msra.mxu0 0.0
    %1360 = vmatprep.subr.mxu0 0.0
    %1361 = vmatpush2.msra.mxu0 0.0
    %1362 = vmatprep.subr.mxu0 0.0
    %1363 = vmatpush2.msra.mxu0 0.0
    %1364 = vmatprep.subr.mxu0 0.0
    %1365 = vmatpush2.msra.mxu0 0.0
    %1366 = vmatprep.mubr.f32.mxu0 0.0
    %1367 = vmatmul.mubr.f32.gmra.mxu0 %v1297
    %v1368 = vpop.f32.mrf.mxu0
    %v1369 = vadd.f32 %v1288, %v1368
    %v1370 = vpop.f32.mrf.mxu0
    %1371 = vmatprep.mubr.f32.mxu0 0.0
    %1372 = vmatmul.mubr.f32.gmra.mxu0 %v1300
    %v1373 = vpop.f32.mrf.mxu0
    %v1374 = vadd.f32 %v1293, %v1373
    %v1375 = vpop.f32.mrf.mxu0
    %1376 = vdwg.mxu0
    %v1378 = vsel %vm46, %v1213, 0
    %v1381 = vsel %vm46, %v1214, 0
    %1383 = vmatprep.subr.mxu0 0.0
    %1384 = vmatpush1.msra.mxu0 0.0
    %1385 = vmatprep.subr.mxu0 0.0
    %1386 = vmatpush1.msra.mxu0 0.0
    %1387 = vmatprep.subr.mxu0 0.0
    %1388 = vmatpush1.msra.mxu0 0.0
    %1389 = vmatprep.subr.mxu0 0.0
    %1390 = vmatpush1.msra.mxu0 0.0
    %1391 = vmatprep.subr.mxu0 0.0
    %1392 = vmatpush1.msra.mxu0 0.0
    %1393 = vmatprep.subr.mxu0 0.0
    %1394 = vmatpush1.msra.mxu0 0.0
    %1395 = vmatprep.subr.mxu0 0.0
    %1396 = vmatpush1.msra.mxu0 0.0
    %1397 = vmatprep.subr.mxu0 0.0
    %1398 = vmatpush1.msra.mxu0 0.0
    %1399 = vmatprep.subr.mxu0 0.0
    %1400 = vmatpush1.msra.mxu0 0.0
    %1401 = vmatprep.subr.mxu0 0.0
    %1402 = vmatpush1.msra.mxu0 0.0
    %1403 = vmatprep.subr.mxu0 0.0
    %1404 = vmatpush1.msra.mxu0 0.0
    %1405 = vmatprep.subr.mxu0 0.0
    %1406 = vmatpush1.msra.mxu0 0.0
    %1407 = vmatprep.subr.mxu0 0.0
    %1408 = vmatpush1.msra.mxu0 %v1201
    %1409 = vmatprep.subr.mxu0 0.0
    %1410 = vmatpush1.msra.mxu0 %v1200
    %1411 = vmatprep.subr.mxu0 0.0
    %1412 = vmatpush1.msra.mxu0 %v1199
    %1413 = vmatprep.subr.mxu0 0.0
    %1414 = vmatpush1.msra.mxu0 %v1198
    %1415 = vmatprep.subr.mxu0 0.0
    %1416 = vmatpush2.msra.mxu0 0.0
    %1417 = vmatprep.subr.mxu0 0.0
    %1418 = vmatpush2.msra.mxu0 0.0
    %1419 = vmatprep.subr.mxu0 0.0
    %1420 = vmatpush2.msra.mxu0 0.0
    %1421 = vmatprep.subr.mxu0 0.0
    %1422 = vmatpush2.msra.mxu0 0.0
    %1423 = vmatprep.subr.mxu0 0.0
    %1424 = vmatpush2.msra.mxu0 0.0
    %1425 = vmatprep.subr.mxu0 0.0
    %1426 = vmatpush2.msra.mxu0 0.0
    %1427 = vmatprep.subr.mxu0 0.0
    %1428 = vmatpush2.msra.mxu0 0.0
    %1429 = vmatprep.subr.mxu0 0.0
    %1430 = vmatpush2.msra.mxu0 0.0
    %1431 = vmatprep.subr.mxu0 0.0
    %1432 = vmatpush2.msra.mxu0 0.0
    %1433 = vmatprep.subr.mxu0 0.0
    %1434 = vmatpush2.msra.mxu0 0.0
    %1435 = vmatprep.subr.mxu0 0.0
    %1436 = vmatpush2.msra.mxu0 0.0
    %1437 = vmatprep.subr.mxu0 0.0
    %1438 = vmatpush2.msra.mxu0 0.0
    %1439 = vmatprep.subr.mxu0 0.0
    %1440 = vmatpush2.msra.mxu0 0.0
    %1441 = vmatprep.subr.mxu0 0.0
    %1442 = vmatpush2.msra.mxu0 0.0
    %1443 = vmatprep.subr.mxu0 0.0
    %1444 = vmatpush2.msra.mxu0 0.0
    %1445 = vmatprep.subr.mxu0 0.0
    %1446 = vmatpush2.msra.mxu0 0.0
    %1447 = vmatprep.mubr.f32.mxu0 0.0
    %1448 = vmatmul.mubr.f32.gmra.mxu0 %v1378
    %v1449 = vpop.f32.mrf.mxu0
    %v1450 = vadd.f32 0.0, %v1449
    %v1451 = vpop.f32.mrf.mxu0
    %1452 = vmatprep.mubr.f32.mxu0 0.0
    %1453 = vmatmul.mubr.f32.gmra.mxu0 %v1381
    %v1454 = vpop.f32.mrf.mxu0
    %v1455 = vadd.f32 0.0, %v1454
    %v1456 = vpop.f32.mrf.mxu0
    %1457 = vdwg.mxu0
    %v1458 = vadd.f32 %v1369, %v1450
    %v1459 = vadd.f32 %v1374, %v1455
    %v1460 = vlaneseq
    %v1461 = vshrl.u32 %v1460, 7
    %v1462 = vsub.s32 0, %v1461
    %v1463 = vrot.slane %v1202, %v1462
    %v1464 = vadd.f32 %v1458, %v1463
    %v1465 = vadd.f32 %v1459, %v1463
    %v1466 = vxor.u32 %v1464, 2147483648
    %v1467 = vxor.u32 %v1465, 2147483648
    %v1468 = vmul.f32 %v1466, 1.442695
    %v1469 = vpow.pop %v1468
    %v1470 = vmul.f32 %v1467, 1.442695
    %v1471 = vpow.pop %v1470
    %v1472 = vadd.f32 %v1469, 1.0
    %v1473 = vadd.f32 %v1471, 1.0
    %v1474 = vrcp.pop %v1472
    %v1475 = vmul.f32 1.0, %v1474
    %v1476 = vrcp.pop %v1473
    %v1477 = vmul.f32 1.0, %v1476
    %v1478 = vsub.f32 %v1464, %v1181
    %v1479 = vsub.f32 %v1465, %v1186
    %1482 = vrot.lane.b32.xlu0 %v1478, 32
    %v1483 = vpop.permute.xlu0 %1482
    %1484 = vrot.lane.b32.xlu0 %v1479, 32
    %v1485 = vpop.permute.xlu0 %1484
    %v1488 = vmul.f32 %v1475, %v1483
    %v1489 = vmul.f32 %v1477, %v1485
    %1492 = vrot.lane.b32.xlu0 %v1488, 96
    %v1493 = vpop.permute.xlu0 %1492
    %1494 = vrot.lane.b32.xlu0 %v1489, 96
    %v1495 = vpop.permute.xlu0 %1494
    %v1498 = vadd.f32 %v1181, %v1493
    %v1499 = vadd.f32 %v1186, %v1495
    %v1500 = vmul.f32 %v1498, %v509
    %v1501 = vmul.f32 %v1499, %v514
    %s1502 = scalar_lea.vmem %s3, 64
    %v1503 = vld [vmem:[%s1502] sm:$0xff]
    %v1504 = vld [vmem:[%s1502 + $0x8] sm:$0xff]
    %v1505 = vld [vmem:[%s1502 + $0x10] sm:$0xff]
    %v1506 = vld [vmem:[%s1502 + $0x18] sm:$0xff]
    %v1508 = vsel %vm46, %v1500, 0
    %v1511 = vsel %vm46, %v1501, 0
    %1513 = vmatprep.subr.mxu0 0.0
    %1514 = vmatpush1.msra.mxu0 0.0
    %1515 = vmatprep.subr.mxu0 0.0
    %1516 = vmatpush1.msra.mxu0 0.0
    %1517 = vmatprep.subr.mxu0 0.0
    %1518 = vmatpush1.msra.mxu0 0.0
    %1519 = vmatprep.subr.mxu0 0.0
    %1520 = vmatpush1.msra.mxu0 0.0
    %1521 = vmatprep.subr.mxu0 0.0
    %1522 = vmatpush1.msra.mxu0 0.0
    %1523 = vmatprep.subr.mxu0 0.0
    %1524 = vmatpush1.msra.mxu0 0.0
    %1525 = vmatprep.subr.mxu0 0.0
    %1526 = vmatpush1.msra.mxu0 0.0
    %1527 = vmatprep.subr.mxu0 0.0
    %1528 = vmatpush1.msra.mxu0 0.0
    %1529 = vmatprep.subr.mxu0 0.0
    %1530 = vmatpush1.msra.mxu0 0.0
    %1531 = vmatprep.subr.mxu0 0.0
    %1532 = vmatpush1.msra.mxu0 0.0
    %1533 = vmatprep.subr.mxu0 0.0
    %1534 = vmatpush1.msra.mxu0 0.0
    %1535 = vmatprep.subr.mxu0 0.0
    %1536 = vmatpush1.msra.mxu0 0.0
    %1537 = vmatprep.subr.mxu0 0.0
    %1538 = vmatpush1.msra.mxu0 %v1506
    %1539 = vmatprep.subr.mxu0 0.0
    %1540 = vmatpush1.msra.mxu0 %v1505
    %1541 = vmatprep.subr.mxu0 0.0
    %1542 = vmatpush1.msra.mxu0 %v1504
    %1543 = vmatprep.subr.mxu0 0.0
    %1544 = vmatpush1.msra.mxu0 %v1503
    %1545 = vmatprep.subr.mxu0 0.0
    %1546 = vmatpush2.msra.mxu0 0.0
    %1547 = vmatprep.subr.mxu0 0.0
    %1548 = vmatpush2.msra.mxu0 0.0
    %1549 = vmatprep.subr.mxu0 0.0
    %1550 = vmatpush2.msra.mxu0 0.0
    %1551 = vmatprep.subr.mxu0 0.0
    %1552 = vmatpush2.msra.mxu0 0.0
    %1553 = vmatprep.subr.mxu0 0.0
    %1554 = vmatpush2.msra.mxu0 0.0
    %1555 = vmatprep.subr.mxu0 0.0
    %1556 = vmatpush2.msra.mxu0 0.0
    %1557 = vmatprep.subr.mxu0 0.0
    %1558 = vmatpush2.msra.mxu0 0.0
    %1559 = vmatprep.subr.mxu0 0.0
    %1560 = vmatpush2.msra.mxu0 0.0
    %1561 = vmatprep.subr.mxu0 0.0
    %1562 = vmatpush2.msra.mxu0 0.0
    %1563 = vmatprep.subr.mxu0 0.0
    %1564 = vmatpush2.msra.mxu0 0.0
    %1565 = vmatprep.subr.mxu0 0.0
    %1566 = vmatpush2.msra.mxu0 0.0
    %1567 = vmatprep.subr.mxu0 0.0
    %1568 = vmatpush2.msra.mxu0 0.0
    %1569 = vmatprep.subr.mxu0 0.0
    %1570 = vmatpush2.msra.mxu0 0.0
    %1571 = vmatprep.subr.mxu0 0.0
    %1572 = vmatpush2.msra.mxu0 0.0
    %1573 = vmatprep.subr.mxu0 0.0
    %1574 = vmatpush2.msra.mxu0 0.0
    %1575 = vmatprep.subr.mxu0 0.0
    %1576 = vmatpush2.msra.mxu0 0.0
    %1577 = vmatprep.mubr.f32.mxu0 0.0
    %1578 = vmatmul.mubr.f32.gmra.mxu0 %v1508
    %v1579 = vpop.f32.mrf.mxu0
    %v1580 = vadd.f32 0.0, %v1579
    %v1581 = vpop.f32.mrf.mxu0
    %1582 = vmatprep.mubr.f32.mxu0 0.0
    %1583 = vmatmul.mubr.f32.gmra.mxu0 %v1511
    %v1584 = vpop.f32.mrf.mxu0
    %v1585 = vadd.f32 0.0, %v1584
    %v1586 = vpop.f32.mrf.mxu0
    %1587 = vdwg.mxu0
    %v1588 = vmax.f32 %v1580, 0.0
    %v1589 = vmax.f32 %v1585, 0.0
    %s1590 = scalar_lea.vmem %s4, 256
    %v1591 = vld [vmem:[%s1590] sm:$0xff]
    %v1592 = vld [vmem:[%s1590 + $0x8] sm:$0xff]
    %v1593 = vld [vmem:[%s1590 + $0x10] sm:$0xff]
    %v1594 = vld [vmem:[%s1590 + $0x18] sm:$0xff]
    %v1595 = vld [vmem:[%s1590 + $0x20] sm:$0xff]
    %v1596 = vld [vmem:[%s1590 + $0x28] sm:$0xff]
    %v1597 = vld [vmem:[%s1590 + $0x30] sm:$0xff]
    %v1598 = vld [vmem:[%s1590 + $0x38] sm:$0xff]
    %v1599 = vld [vmem:[%s1590 + $0x40] sm:$0xff]
    %v1600 = vld [vmem:[%s1590 + $0x48] sm:$0xff]
    %v1601 = vld [vmem:[%s1590 + $0x50] sm:$0xff]
    %v1602 = vld [vmem:[%s1590 + $0x58] sm:$0xff]
    %v1603 = vld [vmem:[%s1590 + $0x60] sm:$0xff]
    %v1604 = vld [vmem:[%s1590 + $0x68] sm:$0xff]
    %v1605 = vld [vmem:[%s1590 + $0x70] sm:$0xff]
    %v1606 = vld [vmem:[%s1590 + $0x78] sm:$0xff]
    %1607 = vmatprep.subr.mxu0 0.0
    %1608 = vmatpush1.msra.mxu0 %v1606
    %1609 = vmatprep.subr.mxu0 0.0
    %1610 = vmatpush1.msra.mxu0 %v1605
    %1611 = vmatprep.subr.mxu0 0.0
    %1612 = vmatpush1.msra.mxu0 %v1604
    %1613 = vmatprep.subr.mxu0 0.0
    %1614 = vmatpush1.msra.mxu0 %v1603
    %1615 = vmatprep.subr.mxu0 0.0
    %1616 = vmatpush1.msra.mxu0 %v1602
    %1617 = vmatprep.subr.mxu0 0.0
    %1618 = vmatpush1.msra.mxu0 %v1601
    %1619 = vmatprep.subr.mxu0 0.0
    %1620 = vmatpush1.msra.mxu0 %v1600
    %1621 = vmatprep.subr.mxu0 0.0
    %1622 = vmatpush1.msra.mxu0 %v1599
    %1623 = vmatprep.subr.mxu0 0.0
    %1624 = vmatpush1.msra.mxu0 %v1598
    %1625 = vmatprep.subr.mxu0 0.0
    %1626 = vmatpush1.msra.mxu0 %v1597
    %1627 = vmatprep.subr.mxu0 0.0
    %1628 = vmatpush1.msra.mxu0 %v1596
    %1629 = vmatprep.subr.mxu0 0.0
    %1630 = vmatpush1.msra.mxu0 %v1595
    %1631 = vmatprep.subr.mxu0 0.0
    %1632 = vmatpush1.msra.mxu0 %v1594
    %1633 = vmatprep.subr.mxu0 0.0
    %1634 = vmatpush1.msra.mxu0 %v1593
    %1635 = vmatprep.subr.mxu0 0.0
    %1636 = vmatpush1.msra.mxu0 %v1592
    %1637 = vmatprep.subr.mxu0 0.0
    %1638 = vmatpush1.msra.mxu0 %v1591
    %1639 = vmatprep.subr.mxu0 0.0
    %1640 = vmatpush2.msra.mxu0 0.0
    %1641 = vmatprep.subr.mxu0 0.0
    %1642 = vmatpush2.msra.mxu0 0.0
    %1643 = vmatprep.subr.mxu0 0.0
    %1644 = vmatpush2.msra.mxu0 0.0
    %1645 = vmatprep.subr.mxu0 0.0
    %1646 = vmatpush2.msra.mxu0 0.0
    %1647 = vmatprep.subr.mxu0 0.0
    %1648 = vmatpush2.msra.mxu0 0.0
    %1649 = vmatprep.subr.mxu0 0.0
    %1650 = vmatpush2.msra.mxu0 0.0
    %1651 = vmatprep.subr.mxu0 0.0
    %1652 = vmatpush2.msra.mxu0 0.0
    %1653 = vmatprep.subr.mxu0 0.0
    %1654 = vmatpush2.msra.mxu0 0.0
    %1655 = vmatprep.subr.mxu0 0.0
    %1656 = vmatpush2.msra.mxu0 0.0
    %1657 = vmatprep.subr.mxu0 0.0
    %1658 = vmatpush2.msra.mxu0 0.0
    %1659 = vmatprep.subr.mxu0 0.0
    %1660 = vmatpush2.msra.mxu0 0.0
    %1661 = vmatprep.subr.mxu0 0.0
    %1662 = vmatpush2.msra.mxu0 0.0
    %1663 = vmatprep.subr.mxu0 0.0
    %1664 = vmatpush2.msra.mxu0 0.0
    %1665 = vmatprep.subr.mxu0 0.0
    %1666 = vmatpush2.msra.mxu0 0.0
    %1667 = vmatprep.subr.mxu0 0.0
    %1668 = vmatpush2.msra.mxu0 0.0
    %1669 = vmatprep.subr.mxu0 0.0
    %1670 = vmatpush2.msra.mxu0 0.0
    %1671 = vmatprep.mubr.f32.mxu0 0.0
    %1672 = vmatmul.mubr.f32.gmra.mxu0 %v1588
    %v1673 = vpop.f32.mrf.mxu0
    %v1674 = vadd.f32 0.0, %v1673
    %v1675 = vpop.f32.mrf.mxu0
    %1676 = vmatprep.mubr.f32.mxu0 0.0
    %1677 = vmatmul.mubr.f32.gmra.mxu0 %v1589
    %v1678 = vpop.f32.mrf.mxu0
    %v1679 = vadd.f32 0.0, %v1678
    %v1680 = vpop.f32.mrf.mxu0
    %1681 = vdwg.mxu0
    %v1682 = vld [vmem:[%s5 + $0x8] sm:$0xff]
    %v1683 = vld [vmem:[%s5 + $0x10] sm:$0xff]
    %v1684 = vld [vmem:[%s5 + $0x18] sm:$0xff]
    %v1685 = vld [vmem:[%s5 + $0x20] sm:$0xff]
    %v1686 = vld [vmem:[%s5 + $0x5] sm:$0x1]
    %v1687 = vlaneseq
    %v1688 = vshrl.u32 %v1687, 7
    %v1689 = vsub.s32 0, %v1688
    %v1690 = vrot.slane %v1686, %v1689
    %v1692 = vsel %vm46, %v1674, 0
    %v1695 = vsel %vm46, %v1679, 0
    %1697 = vmatprep.subr.mxu0 0.0
    %1698 = vmatpush1.msra.mxu0 0.0
    %1699 = vmatprep.subr.mxu0 0.0
    %1700 = vmatpush1.msra.mxu0 0.0
    %1701 = vmatprep.subr.mxu0 0.0
    %1702 = vmatpush1.msra.mxu0 0.0
    %1703 = vmatprep.subr.mxu0 0.0
    %1704 = vmatpush1.msra.mxu0 0.0
    %1705 = vmatprep.subr.mxu0 0.0
    %1706 = vmatpush1.msra.mxu0 0.0
    %1707 = vmatprep.subr.mxu0 0.0
    %1708 = vmatpush1.msra.mxu0 0.0
    %1709 = vmatprep.subr.mxu0 0.0
    %1710 = vmatpush1.msra.mxu0 0.0
    %1711 = vmatprep.subr.mxu0 0.0
    %1712 = vmatpush1.msra.mxu0 0.0
    %1713 = vmatprep.subr.mxu0 0.0
    %1714 = vmatpush1.msra.mxu0 0.0
    %1715 = vmatprep.subr.mxu0 0.0
    %1716 = vmatpush1.msra.mxu0 0.0
    %1717 = vmatprep.subr.mxu0 0.0
    %1718 = vmatpush1.msra.mxu0 0.0
    %1719 = vmatprep.subr.mxu0 0.0
    %1720 = vmatpush1.msra.mxu0 0.0
    %1721 = vmatprep.subr.mxu0 0.0
    %1722 = vmatpush1.msra.mxu0 %v1685
    %1723 = vmatprep.subr.mxu0 0.0
    %1724 = vmatpush1.msra.mxu0 %v1684
    %1725 = vmatprep.subr.mxu0 0.0
    %1726 = vmatpush1.msra.mxu0 %v1683
    %1727 = vmatprep.subr.mxu0 0.0
    %1728 = vmatpush1.msra.mxu0 %v1682
    %1729 = vmatprep.subr.mxu0 0.0
    %1730 = vmatpush2.msra.mxu0 0.0
    %1731 = vmatprep.subr.mxu0 0.0
    %1732 = vmatpush2.msra.mxu0 0.0
    %1733 = vmatprep.subr.mxu0 0.0
    %1734 = vmatpush2.msra.mxu0 0.0
    %1735 = vmatprep.subr.mxu0 0.0
    %1736 = vmatpush2.msra.mxu0 0.0
    %1737 = vmatprep.subr.mxu0 0.0
    %1738 = vmatpush2.msra.mxu0 0.0
    %1739 = vmatprep.subr.mxu0 0.0
    %1740 = vmatpush2.msra.mxu0 0.0
    %1741 = vmatprep.subr.mxu0 0.0
    %1742 = vmatpush2.msra.mxu0 0.0
    %1743 = vmatprep.subr.mxu0 0.0
    %1744 = vmatpush2.msra.mxu0 0.0
    %1745 = vmatprep.subr.mxu0 0.0
    %1746 = vmatpush2.msra.mxu0 0.0
    %1747 = vmatprep.subr.mxu0 0.0
    %1748 = vmatpush2.msra.mxu0 0.0
    %1749 = vmatprep.subr.mxu0 0.0
    %1750 = vmatpush2.msra.mxu0 0.0
    %1751 = vmatprep.subr.mxu0 0.0
    %1752 = vmatpush2.msra.mxu0 0.0
    %1753 = vmatprep.subr.mxu0 0.0
    %1754 = vmatpush2.msra.mxu0 0.0
    %1755 = vmatprep.subr.mxu0 0.0
    %1756 = vmatpush2.msra.mxu0 0.0
    %1757 = vmatprep.subr.mxu0 0.0
    %1758 = vmatpush2.msra.mxu0 0.0
    %1759 = vmatprep.subr.mxu0 0.0
    %1760 = vmatpush2.msra.mxu0 0.0
    %1761 = vmatprep.mubr.f32.mxu0 0.0
    %1762 = vmatmul.mubr.f32.gmra.mxu0 %v1692
    %v1763 = vpop.f32.mrf.mxu0
    %v1764 = vadd.f32 %v1690, %v1763
    %v1765 = vpop.f32.mrf.mxu0
    %1766 = vmatprep.mubr.f32.mxu0 0.0
    %1767 = vmatmul.mubr.f32.gmra.mxu0 %v1695
    %v1768 = vpop.f32.mrf.mxu0
    %v1769 = vadd.f32 %v1690, %v1768
    %v1770 = vpop.f32.mrf.mxu0
    %1771 = vdwg.mxu0
    %1772 = vst [vmem:[#allocation2] sm:$0xff] %v1764
    %s1773 = scalar_lea.vmem [#allocation2], 8
    %1774 = vst [vmem:[%s1773] sm:$0xff] %v1769
    // Predicated region
    $region26: #{couplet_forward.1} parent=1 // pred_check
      _
    $region27: #{couplet_forward.1} parent=1 // pred_check_branch
      %1776 = sbr.rel (0) target = $region29
    $region28: #{couplet_forward.1} parent=1 // pred_region
      %s1778 = ssub.s32 256, 256
      %1779 = vsyncadd [#allocation3], %s1778
      %s1780 = sshll.u32 [#allocation2], 4
      %s1781 = int_to_ptr.vmem [resolvable:$true] %s1780
      %1786 = dma.vmem_to_hbm [thread:$0]  %s1781, 256, %s6, [#allocation3], 128, 128, 8
    $region29: #{couplet_forward.1} parent=1 // pred_fallthru
      _
    // Predicated region
    $region30: #{couplet_forward.1} parent=1 // pred_check
      _
    $region31: #{couplet_forward.1} parent=1 // pred_check_branch
      %1788 = sbr.rel (0) target = $region33
    $region32: #{couplet_forward.1} parent=1 // pred_region
      %1789 = dma.done [#allocation3], 256
    $region33: #{couplet_forward.1} parent=1 // pred_fallthru
      _
    %1790 = vsyncpa [#allocation3], 1

</llo_original>
